<compile_context>
chip_gen: v7x
topology: tpu7x:2x2x1
jax: 0.10.0
libtpu: 0.0.40
codegen_flags: <defaults>
</compile_context>

<pallas_src>
import functools

import jax
import jax.numpy as jnp
from jax.experimental import pallas as pl
from jax.experimental.pallas import tpu as pltpu


def _round_up(x, m):
    return (x + m - 1) // m * m


# --------------------------------------------------------------------------- #
# Kernel: one batch tile of the fused IMC forward, entirely in VMEM.
# --------------------------------------------------------------------------- #
def _imc_kernel(xk_ref, xc_ref,
                wk1_ref, wc1_ref, b1_ref,
                w2_ref, b2_ref, w3_ref, b3_ref, w4_ref, b4_ref,
                out_ref):
    # xk_ref : [tile_n, DK] f32    xc_ref : [tile_n, DC] f32
    # wk1/wc1: per-tower layer-1 weights, bf16, [DK,128] / [DC,128]
    # w2..w4 : block-diagonal fused weights, bf16, [in, out]
    # b1..b4 : fused biases, f32, [1, out]
    # out    : [1, tile_n] f32  (lane-dense sigmoid scores)

    # In-kernel f32 -> bf16 cast (avoids a bf16 staging copy in HBM).
    xk = xk_ref[...].astype(jnp.bfloat16)
    xc = xc_ref[...].astype(jnp.bfloat16)

    # Layer 1: two per-tower matmuls (bf16 operands, f32 accumulation).
    zk = jnp.dot(xk, wk1_ref[...], preferred_element_type=jnp.float32)  # [T,128]
    zc = jnp.dot(xc, wc1_ref[...], preferred_element_type=jnp.float32)  # [T,128]
    h = jnp.tanh(jnp.concatenate([zk, zc], axis=1) + b1_ref[...])       # [T,256]

    def dense_tanh(h_f32, w_ref, b_ref):
        z = jnp.dot(h_f32.astype(jnp.bfloat16), w_ref[...],
                    preferred_element_type=jnp.float32)
        return jnp.tanh(z + b_ref[...])

    h = dense_tanh(h, w2_ref, b2_ref)   # [T, 128]
    h = dense_tanh(h, w3_ref, b3_ref)   # [T, 64]
    h = dense_tanh(h, w4_ref, b4_ref)   # [T, 2*DH]

    # Interaction: multiply kinase / compound halves first (VPU, [T,DH] f32),
    # then transpose the smaller product and sublane-reduce -> lane-dense [1,T].
    dh = h.shape[1] // 2
    p = h[:, :dh] * h[:, dh:]                              # [T, DH] f32
    score = jnp.sum(p.T, axis=0, keepdims=True)            # [1, T]
    out_ref[...] = jax.nn.sigmoid(score)


# --------------------------------------------------------------------------- #
# One-time parameter fusion (hoisted out of the per-call path).
# --------------------------------------------------------------------------- #
def _block_diag(wk, wc, dtype=jnp.bfloat16):
    ki, ko = wk.shape
    ci, co = wc.shape
    W = jnp.zeros((ki + ci, ko + co), dtype)
    W = W.at[:ki, :ko].set(wk.astype(dtype))
    W = W.at[ki:, ko:].set(wc.astype(dtype))
    return W


def fuse_imc_params(params):
    """params: dict 'WK1'..'WK4','WC1'..'WC4' -> (W [in,out], b [out]).
    Returns the fused / cast arrays consumed by the kernel.  Call once."""
    wk1, bk1 = params["WK1"]; wk2, bk2 = params["WK2"]
    wk3, bk3 = params["WK3"]; wk4, bk4 = params["WK4"]
    wc1, bc1 = params["WC1"]; wc2, bc2 = params["WC2"]
    wc3, bc3 = params["WC3"]; wc4, bc4 = params["WC4"]

    def bias(bk, bc):
        return jnp.concatenate([bk, bc]).reshape(1, -1).astype(jnp.float32)

    return {
        "wk1": wk1.astype(jnp.bfloat16),
        "wc1": wc1.astype(jnp.bfloat16),
        "b1": bias(bk1, bc1),
        "w2": _block_diag(wk2, wc2), "b2": bias(bk2, bc2),
        "w3": _block_diag(wk3, wc3), "b3": bias(bk3, bc3),
        "w4": _block_diag(wk4, wc4), "b4": bias(bk4, bc4),
    }


# --------------------------------------------------------------------------- #
# Forward wrapper
# --------------------------------------------------------------------------- #
def pick_tile_n(n, target=512):
    """Largest tile <= target that still leaves >= 2 grid steps (v7x megacore),
    rounded to a multiple of 128 for the MXU M dimension."""
    half = _round_up(max(pl.cdiv(max(n, 1), 2), 1), 128)
    return max(128, min(target, half))


@functools.partial(jax.jit, static_argnames=("tile_n",))
def imc_forward(kinase, compound, fused, *, tile_n=512):
    N, DK = kinase.shape
    N2, DC = compound.shape
    assert N == N2, "kinase / compound batch mismatch"
    assert tile_n % 128 == 0, "tile_n must be a multiple of 128"

    kinase = kinase.astype(jnp.float32)
    compound = compound.astype(jnp.float32)

    # Only the batch is padded (no feature padding / concat / bf16 HBM copy);
    # this is a no-op when N already divides tile_n.
    Np = _round_up(max(N, 1), tile_n)
    if Np != N:
        kinase = jnp.pad(kinase, ((0, Np - N), (0, 0)))
        compound = jnp.pad(compound, ((0, Np - N), (0, 0)))

    flat_w = [fused["wk1"], fused["wc1"], fused["b1"],
              fused["w2"], fused["b2"],
              fused["w3"], fused["b3"],
              fused["w4"], fused["b4"]]

    # Weights/biases are small (<1 MiB total) with constant index_maps, so they
    # are fetched once and kept resident across grid steps.
    in_specs = [pl.BlockSpec((tile_n, DK), lambda i: (i, 0)),
                pl.BlockSpec((tile_n, DC), lambda i: (i, 0))] + \
               [pl.BlockSpec(a.shape, lambda i: (0, 0)) for a in flat_w]
    out_spec = pl.BlockSpec((1, tile_n), lambda i: (0, i))   # lane-dense scores

    out = pl.pallas_call(
        _imc_kernel,
        out_shape=jax.ShapeDtypeStruct((1, Np), jnp.float32),
        grid_spec=pltpu.PrefetchScalarGridSpec(
            num_scalar_prefetch=0,
            grid=(Np // tile_n,),
            in_specs=in_specs,
            out_specs=out_spec,
        ),
        compiler_params=pltpu.CompilerParams(
            dimension_semantics=("parallel",),
        ),
    )(kinase, compound, *flat_w)

    return out[0, :N].reshape(N, 1)


# --------------------------------------------------------------------------- #
# Init + references
# --------------------------------------------------------------------------- #
def init_params(key, dim_kinase=343, dim_compound=166, dim_hidden=64):
    """Xavier-normal weights with gain for 'relu' (matches the PyTorch
    reset_parameters); PyTorch-default uniform biases.  Weights are [in, out]."""
    sizes = {
        "WK1": (dim_kinase, 128), "WK2": (128, 64),
        "WK3": (64, 32),          "WK4": (32, dim_hidden),
        "WC1": (dim_compound, 128), "WC2": (128, 64),
        "WC3": (64, 32),            "WC4": (32, dim_hidden),
    }
    gain = jnp.sqrt(2.0)
    params = {}
    for i, (name, (din, dout)) in enumerate(sizes.items()):
        kw, kb = jax.random.split(jax.random.fold_in(key, i))
        std = gain * jnp.sqrt(2.0 / (din + dout))
        w = std * jax.random.normal(kw, (din, dout), dtype=jnp.float32)
        bound = 1.0 / jnp.sqrt(din)
        b = jax.random.uniform(kb, (dout,), minval=-bound, maxval=bound,
                               dtype=jnp.float32)
        params[name] = (w, b)
    return params


def imc_reference_f32(kinase, compound, params):
    """Pure-f32 JAX reference of the PyTorch forward."""
    def tower(x, names):
        h = x
        for n in names:
            w, b = params[n]
            h = jnp.tanh(h @ w + b)
        return h
    hk = tower(kinase, ("WK1", "WK2", "WK3", "WK4"))
    hc = tower(compound, ("WC1", "WC2", "WC3", "WC4"))
    return jax.nn.sigmoid(jnp.sum(hk * hc, axis=1, keepdims=True))


def imc_reference_mixed(kinase, compound, params):
    """JAX reference using the same bf16-operand / f32-accumulate recipe as the
    kernel (tight tolerance check)."""
    def tower(x, names):
        h = x.astype(jnp.bfloat16)
        out = None
        for n in names:
            w, b = params[n]
            z = jnp.dot(h, w.astype(jnp.bfloat16),
                        preferred_element_type=jnp.float32)
            out = jnp.tanh(z + b.astype(jnp.float32))
            h = out.astype(jnp.bfloat16)
        return out
    hk = tower(kinase, ("WK1", "WK2", "WK3", "WK4"))
    hc = tower(compound, ("WC1", "WC2", "WC3", "WC4"))
    return jax.nn.sigmoid(jnp.sum(hk * hc, axis=1, keepdims=True))


# --------------------------------------------------------------------------- #
if __name__ == "__main__":
    key = jax.random.PRNGKey(0)
    k_params, k_kin, k_cmp = jax.random.split(key, 3)

    DK, DC, DH = 343, 166, 64
    N = 300                       # non-multiple of the tile: exercises padding

    params = init_params(k_params, DK, DC, DH)
    fused = fuse_imc_params(params)            # one-time weight fusion

    kinase = jax.random.normal(k_kin, (N, DK), dtype=jnp.float32)
    compound = jax.random.normal(k_cmp, (N, DC), dtype=jnp.float32)

    TILE_N = pick_tile_n(N)       # 256 -> padded batch 512, grid of 2 steps
    out = imc_forward(kinase, compound, fused, tile_n=TILE_N)
    out = jax.block_until_ready(out)
    assert out.shape == (N, 1), out.shape

    ref_mixed = imc_reference_mixed(kinase, compound, params)
    ref_f32 = imc_reference_f32(kinase, compound, params)

    err_mixed = float(jnp.max(jnp.abs(out - ref_mixed)))
    err_f32 = float(jnp.max(jnp.abs(out - ref_f32)))
    # Tight check vs. a same-precision reference; loose sanity check vs. f32
    # (bf16 matmul operands over a 343-term dot only match f32 loosely).
    assert err_mixed < 5e-3, f"mixed-precision mismatch: max abs err {err_mixed}"
    assert err_f32 < 1.5e-1, f"f32 sanity mismatch: max abs err {err_f32}"

    print("KERNEL_OK")
</pallas_src>

<mosaic_0001>
module attributes {stable_mosaic.version = 11 : i64} {
  func.func @_imc_kernel(%arg0: i32, %arg1: memref<256x343xf32, #tpu.memory_space<vmem>>, %arg2: memref<256x166xf32, #tpu.memory_space<vmem>>, %arg3: memref<343x128xbf16, #tpu.memory_space<vmem>>, %arg4: memref<166x128xbf16, #tpu.memory_space<vmem>>, %arg5: memref<1x256xf32, #tpu.memory_space<vmem>>, %arg6: memref<256x128xbf16, #tpu.memory_space<vmem>>, %arg7: memref<1x128xf32, #tpu.memory_space<vmem>>, %arg8: memref<128x64xbf16, #tpu.memory_space<vmem>>, %arg9: memref<1x64xf32, #tpu.memory_space<vmem>>, %arg10: memref<64x128xbf16, #tpu.memory_space<vmem>>, %arg11: memref<1x128xf32, #tpu.memory_space<vmem>>, %arg12: memref<1x256xf32, #tpu.memory_space<vmem>>) attributes {dimension_semantics = [#tpu.dimension_semantics<parallel>], iteration_bounds = array<i64: 2>, scalar_prefetch = 0 : i64, scratch_operands = 0 : i64, tpu.core_type = #tpu.core_type<tc>, window_params = [{transform_indices = @transform_0, window_bounds = array<i64: 256, 343>}, {transform_indices = @transform_1, window_bounds = array<i64: 256, 166>}, {pipeline_mode = #tpu.pipeline_mode<synchronous>, transform_indices = @transform_2, window_bounds = array<i64: 343, 128>}, {pipeline_mode = #tpu.pipeline_mode<synchronous>, transform_indices = @transform_3, window_bounds = array<i64: 166, 128>}, {pipeline_mode = #tpu.pipeline_mode<synchronous>, transform_indices = @transform_4, window_bounds = array<i64: 1, 256>}, {pipeline_mode = #tpu.pipeline_mode<synchronous>, transform_indices = @transform_5, window_bounds = array<i64: 256, 128>}, {pipeline_mode = #tpu.pipeline_mode<synchronous>, transform_indices = @transform_6, window_bounds = array<i64: 1, 128>}, {pipeline_mode = #tpu.pipeline_mode<synchronous>, transform_indices = @transform_7, window_bounds = array<i64: 128, 64>}, {pipeline_mode = #tpu.pipeline_mode<synchronous>, transform_indices = @transform_8, window_bounds = array<i64: 1, 64>}, {pipeline_mode = #tpu.pipeline_mode<synchronous>, transform_indices = @transform_9, window_bounds = array<i64: 64, 128>}, {pipeline_mode = #tpu.pipeline_mode<synchronous>, transform_indices = @transform_10, window_bounds = array<i64: 1, 128>}, {transform_indices = @transform_11, window_bounds = array<i64: 1, 256>}]} {
    %c0 = arith.constant 0 : index
    %c0_0 = arith.constant 0 : index
    %0 = vector.load %arg1[%c0, %c0_0] : memref<256x343xf32, #tpu.memory_space<vmem>>, vector<256x343xf32>
    %1 = arith.truncf %0 : vector<256x343xf32> to vector<256x343xbf16>
    %c0_1 = arith.constant 0 : index
    %c0_2 = arith.constant 0 : index
    %2 = vector.load %arg2[%c0_1, %c0_2] : memref<256x166xf32, #tpu.memory_space<vmem>>, vector<256x166xf32>
    %3 = arith.truncf %2 : vector<256x166xf32> to vector<256x166xbf16>
    %c0_3 = arith.constant 0 : index
    %c0_4 = arith.constant 0 : index
    %4 = vector.load %arg3[%c0_3, %c0_4] : memref<343x128xbf16, #tpu.memory_space<vmem>>, vector<343x128xbf16>
    %cst = arith.constant dense<0.000000e+00> : vector<256x128xf32>
    %5 = tpu.matmul %1, %4, %cst {dimension_numbers = #tpu.dot_dimension_numbers<[1], [0], [0], [1], [0, 0, 1, 1], [], []>} : vector<256x343xbf16>, vector<343x128xbf16>, vector<256x128xf32> -> vector<256x128xf32>
    %c0_5 = arith.constant 0 : index
    %c0_6 = arith.constant 0 : index
    %6 = vector.load %arg4[%c0_5, %c0_6] : memref<166x128xbf16, #tpu.memory_space<vmem>>, vector<166x128xbf16>
    %cst_7 = arith.constant dense<0.000000e+00> : vector<256x128xf32>
    %7 = tpu.matmul %3, %6, %cst_7 {dimension_numbers = #tpu.dot_dimension_numbers<[1], [0], [0], [1], [0, 0, 1, 1], [], []>} : vector<256x166xbf16>, vector<166x128xbf16>, vector<256x128xf32> -> vector<256x128xf32>
    %8 = tpu.concatenate %5, %7 in 1 : vector<256x128xf32>, vector<256x128xf32> -> vector<256x256xf32>
    %c0_8 = arith.constant 0 : index
    %c0_9 = arith.constant 0 : index
    %9 = vector.load %arg5[%c0_8, %c0_9] : memref<1x256xf32, #tpu.memory_space<vmem>>, vector<1x256xf32>
    %10 = vector.broadcast %9 : vector<1x256xf32> to vector<256x256xf32>
    %11 = arith.addf %8, %10 : vector<256x256xf32>
    %12 = math.tanh %11 : vector<256x256xf32>
    %13 = arith.truncf %12 : vector<256x256xf32> to vector<256x256xbf16>
    %c0_10 = arith.constant 0 : index
    %c0_11 = arith.constant 0 : index
    %14 = vector.load %arg6[%c0_10, %c0_11] : memref<256x128xbf16, #tpu.memory_space<vmem>>, vector<256x128xbf16>
    %cst_12 = arith.constant dense<0.000000e+00> : vector<256x128xf32>
    %15 = tpu.matmul %13, %14, %cst_12 {dimension_numbers = #tpu.dot_dimension_numbers<[1], [0], [0], [1], [0, 0, 1, 1], [], []>} : vector<256x256xbf16>, vector<256x128xbf16>, vector<256x128xf32> -> vector<256x128xf32>
    %c0_13 = arith.constant 0 : index
    %c0_14 = arith.constant 0 : index
    %16 = vector.load %arg7[%c0_13, %c0_14] : memref<1x128xf32, #tpu.memory_space<vmem>>, vector<1x128xf32>
    %17 = vector.broadcast %16 : vector<1x128xf32> to vector<256x128xf32>
    %18 = arith.addf %15, %17 : vector<256x128xf32>
    %19 = math.tanh %18 : vector<256x128xf32>
    %20 = arith.truncf %19 : vector<256x128xf32> to vector<256x128xbf16>
    %c0_15 = arith.constant 0 : index
    %c0_16 = arith.constant 0 : index
    %21 = vector.load %arg8[%c0_15, %c0_16] : memref<128x64xbf16, #tpu.memory_space<vmem>>, vector<128x64xbf16>
    %cst_17 = arith.constant dense<0.000000e+00> : vector<256x64xf32>
    %22 = tpu.matmul %20, %21, %cst_17 {dimension_numbers = #tpu.dot_dimension_numbers<[1], [0], [0], [1], [0, 0, 1, 1], [], []>} : vector<256x128xbf16>, vector<128x64xbf16>, vector<256x64xf32> -> vector<256x64xf32>
    %c0_18 = arith.constant 0 : index
    %c0_19 = arith.constant 0 : index
    %23 = vector.load %arg9[%c0_18, %c0_19] : memref<1x64xf32, #tpu.memory_space<vmem>>, vector<1x64xf32>
    %24 = vector.broadcast %23 : vector<1x64xf32> to vector<256x64xf32>
    %25 = arith.addf %22, %24 : vector<256x64xf32>
    %26 = math.tanh %25 : vector<256x64xf32>
    %27 = arith.truncf %26 : vector<256x64xf32> to vector<256x64xbf16>
    %c0_20 = arith.constant 0 : index
    %c0_21 = arith.constant 0 : index
    %28 = vector.load %arg10[%c0_20, %c0_21] : memref<64x128xbf16, #tpu.memory_space<vmem>>, vector<64x128xbf16>
    %cst_22 = arith.constant dense<0.000000e+00> : vector<256x128xf32>
    %29 = tpu.matmul %27, %28, %cst_22 {dimension_numbers = #tpu.dot_dimension_numbers<[1], [0], [0], [1], [0, 0, 1, 1], [], []>} : vector<256x64xbf16>, vector<64x128xbf16>, vector<256x128xf32> -> vector<256x128xf32>
    %c0_23 = arith.constant 0 : index
    %c0_24 = arith.constant 0 : index
    %30 = vector.load %arg11[%c0_23, %c0_24] : memref<1x128xf32, #tpu.memory_space<vmem>>, vector<1x128xf32>
    %31 = vector.broadcast %30 : vector<1x128xf32> to vector<256x128xf32>
    %32 = arith.addf %29, %31 : vector<256x128xf32>
    %33 = math.tanh %32 : vector<256x128xf32>
    %34 = vector.extract_strided_slice %33 {offsets = [0, 0], sizes = [256, 64], strides = [1, 1]} : vector<256x128xf32> to vector<256x64xf32>
    %35 = vector.extract_strided_slice %33 {offsets = [0, 64], sizes = [256, 64], strides = [1, 1]} : vector<256x128xf32> to vector<256x64xf32>
    %36 = arith.mulf %34, %35 : vector<256x64xf32>
    %37 = tpu.transpose %36, [1, 0] : vector<256x64xf32> -> vector<64x256xf32>
    %cst_25 = arith.constant dense<0.000000e+00> : vector<256xf32>
    %38 = vector.multi_reduction <add>, %37, %cst_25 [0] : vector<64x256xf32> to vector<256xf32>
    %39 = vector.shape_cast %38 : vector<256xf32> to vector<1x256xf32>
    %40 = arith.negf %39 : vector<1x256xf32>
    %41 = math.exp %40 : vector<1x256xf32>
    %cst_26 = arith.constant 1.000000e+00 : f32
    %42 = vector.broadcast %cst_26 : f32 to vector<1x256xf32>
    %43 = arith.addf %42, %41 : vector<1x256xf32>
    %44 = arith.divf %42, %43 : vector<1x256xf32>
    %c0_27 = arith.constant 0 : index
    %c0_28 = arith.constant 0 : index
    %45 = vector.load %arg12[%c0_27, %c0_28] : memref<1x256xf32, #tpu.memory_space<vmem>>, vector<1x256xf32>
    tpu.vector_store %arg12[%c0_27, %c0_28], %44 {strides = array<i32>} : memref<1x256xf32, #tpu.memory_space<vmem>>, vector<1x256xf32>,
    return
  }
  func.func @transform_0(%arg0: i32) -> (i32, i32) {
    %c0_i32 = arith.constant 0 : i32
    %c0_i32_0 = arith.constant 0 : i32
    return %arg0, %c0_i32 : i32, i32
  }
  func.func @transform_1(%arg0: i32) -> (i32, i32) {
    %c0_i32 = arith.constant 0 : i32
    %c0_i32_0 = arith.constant 0 : i32
    return %arg0, %c0_i32 : i32, i32
  }
  func.func @transform_2(%arg0: i32) -> (i32, i32) {
    %c0_i32 = arith.constant 0 : i32
    %c0_i32_0 = arith.constant 0 : i32
    %c0_i32_1 = arith.constant 0 : i32
    return %c0_i32, %c0_i32_0 : i32, i32
  }
  func.func @transform_3(%arg0: i32) -> (i32, i32) {
    %c0_i32 = arith.constant 0 : i32
    %c0_i32_0 = arith.constant 0 : i32
    %c0_i32_1 = arith.constant 0 : i32
    return %c0_i32, %c0_i32_0 : i32, i32
  }
  func.func @transform_4(%arg0: i32) -> (i32, i32) {
    %c0_i32 = arith.constant 0 : i32
    %c0_i32_0 = arith.constant 0 : i32
    %c0_i32_1 = arith.constant 0 : i32
    return %c0_i32, %c0_i32_0 : i32, i32
  }
  func.func @transform_5(%arg0: i32) -> (i32, i32) {
    %c0_i32 = arith.constant 0 : i32
    %c0_i32_0 = arith.constant 0 : i32
    %c0_i32_1 = arith.constant 0 : i32
    return %c0_i32, %c0_i32_0 : i32, i32
  }
  func.func @transform_6(%arg0: i32) -> (i32, i32) {
    %c0_i32 = arith.constant 0 : i32
    %c0_i32_0 = arith.constant 0 : i32
    %c0_i32_1 = arith.constant 0 : i32
    return %c0_i32, %c0_i32_0 : i32, i32
  }
  func.func @transform_7(%arg0: i32) -> (i32, i32) {
    %c0_i32 = arith.constant 0 : i32
    %c0_i32_0 = arith.constant 0 : i32
    %c0_i32_1 = arith.constant 0 : i32
    return %c0_i32, %c0_i32_0 : i32, i32
  }
  func.func @transform_8(%arg0: i32) -> (i32, i32) {
    %c0_i32 = arith.constant 0 : i32
    %c0_i32_0 = arith.constant 0 : i32
    %c0_i32_1 = arith.constant 0 : i32
    return %c0_i32, %c0_i32_0 : i32, i32
  }
  func.func @transform_9(%arg0: i32) -> (i32, i32) {
    %c0_i32 = arith.constant 0 : i32
    %c0_i32_0 = arith.constant 0 : i32
    %c0_i32_1 = arith.constant 0 : i32
    return %c0_i32, %c0_i32_0 : i32, i32
  }
  func.func @transform_10(%arg0: i32) -> (i32, i32) {
    %c0_i32 = arith.constant 0 : i32
    %c0_i32_0 = arith.constant 0 : i32
    %c0_i32_1 = arith.constant 0 : i32
    return %c0_i32, %c0_i32_0 : i32, i32
  }
  func.func @transform_11(%arg0: i32) -> (i32, i32) {
    %c0_i32 = arith.constant 0 : i32
    %c0_i32_0 = arith.constant 0 : i32
    return %c0_i32, %arg0 : i32, i32
  }
}

</mosaic_0001>

<llo_original>
// kernel: imc_forward.1
$region0: #{imc_forward.1}
  #allocation0 [shape = 'u32[]', space=smem, size = 0x4, offset = 0x4, fixed_abs, tag = 'smem constant byte address 0x4 - core index']
  #allocation1 [shape = 'u32[144,128]{1,0:T(1,128)}', space=vmem, size = 0x12000, scoped, tag = 'internal scratch']
  %s0 = inlined_call_operand.vmem [shape: f32[512,343], index: 0, kind: input, shape index: {}]
  %s1 = inlined_call_operand.vmem [shape: f32[512,166], index: 1, kind: input, shape index: {}]
  %s2 = inlined_call_operand.vmem [shape: bf16[343,128], index: 2, kind: input, shape index: {}]
  %s3 = inlined_call_operand.vmem [shape: bf16[166,128], index: 3, kind: input, shape index: {}]
  %s4 = inlined_call_operand.vmem [shape: f32[1,256], index: 4, kind: input, shape index: {}]
  %s5 = inlined_call_operand.vmem [shape: bf16[256,128], index: 5, kind: input, shape index: {}]
  %s6 = inlined_call_operand.vmem [shape: f32[1,128], index: 6, kind: input, shape index: {}]
  %s7 = inlined_call_operand.vmem [shape: bf16[128,64], index: 7, kind: input, shape index: {}]
  %s8 = inlined_call_operand.vmem [shape: f32[1,64], index: 8, kind: input, shape index: {}]
  %s9 = inlined_call_operand.vmem [shape: bf16[64,128], index: 9, kind: input, shape index: {}]
  %s10 = inlined_call_operand.vmem [shape: f32[1,128], index: 10, kind: input, shape index: {}]
  %s11 = inlined_call_operand.vmem [shape: f32[1,512], index: 11, kind: output, shape index: {}]
  %s12 = sld [smem:[#allocation0]]
  $region77: #{imc_forward.1} parent=0
    _
  %s14 = ssub.s32 1, %s12
  %s15 = scalar_select 0, %s14, %s12
  loop: start=0, step=1, limit=4
  $region2: #{imc_forward.1} parent=0 // loop_pre_header
    _
  $region3: #{imc_forward.1} parent=0 // loop_header
    %s17 = sphi 0, %s21
    %p18 = scmp.ge.s32.totalorder %s17, 4
    %s27 = sphi 0, %s29
    %s30 = sphi 0, %s27
    %s31 = sphi 0, %s30
    %s47 = sphi 0, %s31
    %s53 = sphi 0, %s55
    %s56 = sphi 0, %s53
    %s57 = sphi 0, %s56
    %s73 = sphi 0, %s57
    %s77 = sphi 0, %s77
    %s79 = sphi 0, %s77
    %s80 = sphi 0, %s79
    %s94 = sphi 0, %s80
    %s98 = sphi 0, %s98
    %s100 = sphi 0, %s98
    %s101 = sphi 0, %s100
    %s115 = sphi 0, %s101
    %s119 = sphi 0, %s119
    %s121 = sphi 0, %s119
    %s122 = sphi 0, %s121
    %s136 = sphi 0, %s122
    %s140 = sphi 0, %s140
    %s142 = sphi 0, %s140
    %s143 = sphi 0, %s142
    %s157 = sphi 0, %s143
    %s161 = sphi 0, %s161
    %s163 = sphi 0, %s161
    %s164 = sphi 0, %s163
    %s178 = sphi 0, %s164
    %s182 = sphi 0, %s182
    %s184 = sphi 0, %s182
    %s185 = sphi 0, %s184
    %s199 = sphi 0, %s185
    %s203 = sphi 0, %s203
    %s205 = sphi 0, %s203
    %s206 = sphi 0, %s205
    %s220 = sphi 0, %s206
    %s224 = sphi 0, %s224
    %s226 = sphi 0, %s224
    %s227 = sphi 0, %s226
    %s241 = sphi 0, %s227
    %s245 = sphi 0, %s245
    %s247 = sphi 0, %s245
    %s248 = sphi 0, %s247
    %s262 = sphi 0, %s248
    %s268 = sphi 0, %s270
    %s271 = sphi 0, %s268
    %s272 = sphi 0, %s271
    %s288 = sphi 0, %s272
  $region4: #{imc_forward.1} parent=0 // loop_header_branch
    %20 = sbr.rel (%p18) target = $region8
  $region5: #{imc_forward.1} parent=0 // loop_body
    %s22 = ssub.s32 %s17, 1
    %s23 = ssub.s32 %s17, 2
    %s24 = sadd.s32 %s17, 1
    %s25 = ssub.s32 %s17, %s24
    %p26 = scmp.eq.s32.totalorder %s25, 0
    %s28 = sadd.s32 %s27, 1
    %s29 = scalar_select %p26, %s27, %s28
    %p32 = pneg %p26
    %p33 = scmp.eq.s32.totalorder %s17, 1
    %p34 = por %p32, %p33
    %p35 = scmp.ne.s32.totalorder %s27, %s30
    %p36 = scmp.eq.s32.totalorder %s17, 0
    %p37 = por %p35, %p36
    %p38 = scmp.ne.s32.totalorder %s27, %s30
    %p39 = scmp.eq.s32.totalorder %s22, 1
    %p40 = por %p38, %p39
    %p41 = scmp.ne.s32.totalorder %s30, %s31
    %p42 = scmp.eq.s32.totalorder %s22, 0
    %p43 = por %p41, %p42
    %p44 = scmp.ne.s32.totalorder %s30, %s31
    %p45 = scmp.eq.s32.totalorder %s23, 1
    %p46 = por %p44, %p45
    %p48 = scmp.ne.s32.totalorder %s31, %s47
    %p49 = scmp.eq.s32.totalorder %s23, 0
    %p50 = por %p48, %p49
    %s51 = ssub.s32 %s17, %s24
    %p52 = scmp.eq.s32.totalorder %s51, 0
    %s54 = sadd.s32 %s53, 1
    %s55 = scalar_select %p52, %s53, %s54
    %p58 = pneg %p52
    %p59 = scmp.eq.s32.totalorder %s17, 1
    %p60 = por %p58, %p59
    %p61 = scmp.ne.s32.totalorder %s53, %s56
    %p62 = scmp.eq.s32.totalorder %s17, 0
    %p63 = por %p61, %p62
    %p64 = scmp.ne.s32.totalorder %s53, %s56
    %p65 = scmp.eq.s32.totalorder %s22, 1
    %p66 = por %p64, %p65
    %p67 = scmp.ne.s32.totalorder %s56, %s57
    %p68 = scmp.eq.s32.totalorder %s22, 0
    %p69 = por %p67, %p68
    %p70 = scmp.ne.s32.totalorder %s56, %s57
    %p71 = scmp.eq.s32.totalorder %s23, 1
    %p72 = por %p70, %p71
    %p74 = scmp.ne.s32.totalorder %s57, %s73
    %p75 = scmp.eq.s32.totalorder %s23, 0
    %p76 = por %p74, %p75
    %s78 = sadd.s32 %s77, 1
    %p81 = scmp.eq.s32.totalorder %s17, 1
    %p82 = scmp.ne.s32.totalorder %s77, %s79
    %p83 = scmp.eq.s32.totalorder %s17, 0
    %p84 = por %p82, %p83
    %p85 = scmp.ne.s32.totalorder %s77, %s79
    %p86 = scmp.eq.s32.totalorder %s22, 1
    %p87 = por %p85, %p86
    %p88 = scmp.ne.s32.totalorder %s79, %s80
    %p89 = scmp.eq.s32.totalorder %s22, 0
    %p90 = por %p88, %p89
    %p91 = scmp.ne.s32.totalorder %s79, %s80
    %p92 = scmp.eq.s32.totalorder %s23, 1
    %p93 = por %p91, %p92
    %p95 = scmp.ne.s32.totalorder %s80, %s94
    %p96 = scmp.eq.s32.totalorder %s23, 0
    %p97 = por %p95, %p96
    %s99 = sadd.s32 %s98, 1
    %p102 = scmp.eq.s32.totalorder %s17, 1
    %p103 = scmp.ne.s32.totalorder %s98, %s100
    %p104 = scmp.eq.s32.totalorder %s17, 0
    %p105 = por %p103, %p104
    %p106 = scmp.ne.s32.totalorder %s98, %s100
    %p107 = scmp.eq.s32.totalorder %s22, 1
    %p108 = por %p106, %p107
    %p109 = scmp.ne.s32.totalorder %s100, %s101
    %p110 = scmp.eq.s32.totalorder %s22, 0
    %p111 = por %p109, %p110
    %p112 = scmp.ne.s32.totalorder %s100, %s101
    %p113 = scmp.eq.s32.totalorder %s23, 1
    %p114 = por %p112, %p113
    %p116 = scmp.ne.s32.totalorder %s101, %s115
    %p117 = scmp.eq.s32.totalorder %s23, 0
    %p118 = por %p116, %p117
    %s120 = sadd.s32 %s119, 1
    %p123 = scmp.eq.s32.totalorder %s17, 1
    %p124 = scmp.ne.s32.totalorder %s119, %s121
    %p125 = scmp.eq.s32.totalorder %s17, 0
    %p126 = por %p124, %p125
    %p127 = scmp.ne.s32.totalorder %s119, %s121
    %p128 = scmp.eq.s32.totalorder %s22, 1
    %p129 = por %p127, %p128
    %p130 = scmp.ne.s32.totalorder %s121, %s122
    %p131 = scmp.eq.s32.totalorder %s22, 0
    %p132 = por %p130, %p131
    %p133 = scmp.ne.s32.totalorder %s121, %s122
    %p134 = scmp.eq.s32.totalorder %s23, 1
    %p135 = por %p133, %p134
    %p137 = scmp.ne.s32.totalorder %s122, %s136
    %p138 = scmp.eq.s32.totalorder %s23, 0
    %p139 = por %p137, %p138
    %s141 = sadd.s32 %s140, 1
    %p144 = scmp.eq.s32.totalorder %s17, 1
    %p145 = scmp.ne.s32.totalorder %s140, %s142
    %p146 = scmp.eq.s32.totalorder %s17, 0
    %p147 = por %p145, %p146
    %p148 = scmp.ne.s32.totalorder %s140, %s142
    %p149 = scmp.eq.s32.totalorder %s22, 1
    %p150 = por %p148, %p149
    %p151 = scmp.ne.s32.totalorder %s142, %s143
    %p152 = scmp.eq.s32.totalorder %s22, 0
    %p153 = por %p151, %p152
    %p154 = scmp.ne.s32.totalorder %s142, %s143
    %p155 = scmp.eq.s32.totalorder %s23, 1
    %p156 = por %p154, %p155
    %p158 = scmp.ne.s32.totalorder %s143, %s157
    %p159 = scmp.eq.s32.totalorder %s23, 0
    %p160 = por %p158, %p159
    %s162 = sadd.s32 %s161, 1
    %p165 = scmp.eq.s32.totalorder %s17, 1
    %p166 = scmp.ne.s32.totalorder %s161, %s163
    %p167 = scmp.eq.s32.totalorder %s17, 0
    %p168 = por %p166, %p167
    %p169 = scmp.ne.s32.totalorder %s161, %s163
    %p170 = scmp.eq.s32.totalorder %s22, 1
    %p171 = por %p169, %p170
    %p172 = scmp.ne.s32.totalorder %s163, %s164
    %p173 = scmp.eq.s32.totalorder %s22, 0
    %p174 = por %p172, %p173
    %p175 = scmp.ne.s32.totalorder %s163, %s164
    %p176 = scmp.eq.s32.totalorder %s23, 1
    %p177 = por %p175, %p176
    %p179 = scmp.ne.s32.totalorder %s164, %s178
    %p180 = scmp.eq.s32.totalorder %s23, 0
    %p181 = por %p179, %p180
    %s183 = sadd.s32 %s182, 1
    %p186 = scmp.eq.s32.totalorder %s17, 1
    %p187 = scmp.ne.s32.totalorder %s182, %s184
    %p188 = scmp.eq.s32.totalorder %s17, 0
    %p189 = por %p187, %p188
    %p190 = scmp.ne.s32.totalorder %s182, %s184
    %p191 = scmp.eq.s32.totalorder %s22, 1
    %p192 = por %p190, %p191
    %p193 = scmp.ne.s32.totalorder %s184, %s185
    %p194 = scmp.eq.s32.totalorder %s22, 0
    %p195 = por %p193, %p194
    %p196 = scmp.ne.s32.totalorder %s184, %s185
    %p197 = scmp.eq.s32.totalorder %s23, 1
    %p198 = por %p196, %p197
    %p200 = scmp.ne.s32.totalorder %s185, %s199
    %p201 = scmp.eq.s32.totalorder %s23, 0
    %p202 = por %p200, %p201
    %s204 = sadd.s32 %s203, 1
    %p207 = scmp.eq.s32.totalorder %s17, 1
    %p208 = scmp.ne.s32.totalorder %s203, %s205
    %p209 = scmp.eq.s32.totalorder %s17, 0
    %p210 = por %p208, %p209
    %p211 = scmp.ne.s32.totalorder %s203, %s205
    %p212 = scmp.eq.s32.totalorder %s22, 1
    %p213 = por %p211, %p212
    %p214 = scmp.ne.s32.totalorder %s205, %s206
    %p215 = scmp.eq.s32.totalorder %s22, 0
    %p216 = por %p214, %p215
    %p217 = scmp.ne.s32.totalorder %s205, %s206
    %p218 = scmp.eq.s32.totalorder %s23, 1
    %p219 = por %p217, %p218
    %p221 = scmp.ne.s32.totalorder %s206, %s220
    %p222 = scmp.eq.s32.totalorder %s23, 0
    %p223 = por %p221, %p222
    %s225 = sadd.s32 %s224, 1
    %p228 = scmp.eq.s32.totalorder %s17, 1
    %p229 = scmp.ne.s32.totalorder %s224, %s226
    %p230 = scmp.eq.s32.totalorder %s17, 0
    %p231 = por %p229, %p230
    %p232 = scmp.ne.s32.totalorder %s224, %s226
    %p233 = scmp.eq.s32.totalorder %s22, 1
    %p234 = por %p232, %p233
    %p235 = scmp.ne.s32.totalorder %s226, %s227
    %p236 = scmp.eq.s32.totalorder %s22, 0
    %p237 = por %p235, %p236
    %p238 = scmp.ne.s32.totalorder %s226, %s227
    %p239 = scmp.eq.s32.totalorder %s23, 1
    %p240 = por %p238, %p239
    %p242 = scmp.ne.s32.totalorder %s227, %s241
    %p243 = scmp.eq.s32.totalorder %s23, 0
    %p244 = por %p242, %p243
    %s246 = sadd.s32 %s245, 1
    %p249 = scmp.eq.s32.totalorder %s17, 1
    %p250 = scmp.ne.s32.totalorder %s245, %s247
    %p251 = scmp.eq.s32.totalorder %s17, 0
    %p252 = por %p250, %p251
    %p253 = scmp.ne.s32.totalorder %s245, %s247
    %p254 = scmp.eq.s32.totalorder %s22, 1
    %p255 = por %p253, %p254
    %p256 = scmp.ne.s32.totalorder %s247, %s248
    %p257 = scmp.eq.s32.totalorder %s22, 0
    %p258 = por %p256, %p257
    %p259 = scmp.ne.s32.totalorder %s247, %s248
    %p260 = scmp.eq.s32.totalorder %s23, 1
    %p261 = por %p259, %p260
    %p263 = scmp.ne.s32.totalorder %s248, %s262
    %p264 = scmp.eq.s32.totalorder %s23, 0
    %p265 = por %p263, %p264
    %s266 = ssub.s32 %s17, %s24
    %p267 = scmp.eq.s32.totalorder %s266, 0
    %s269 = sadd.s32 %s268, 1
    %s270 = scalar_select %p267, %s268, %s269
    %p273 = pneg %p267
    %p274 = scmp.eq.s32.totalorder %s17, 1
    %p275 = por %p273, %p274
    %p276 = scmp.ne.s32.totalorder %s268, %s271
    %p277 = scmp.eq.s32.totalorder %s17, 0
    %p278 = por %p276, %p277
    %p279 = scmp.ne.s32.totalorder %s268, %s271
    %p280 = scmp.eq.s32.totalorder %s22, 1
    %p281 = por %p279, %p280
    %p282 = scmp.ne.s32.totalorder %s271, %s272
    %p283 = scmp.eq.s32.totalorder %s22, 0
    %p284 = por %p282, %p283
    %p285 = scmp.ne.s32.totalorder %s271, %s272
    %p286 = scmp.eq.s32.totalorder %s23, 1
    %p287 = por %p285, %p286
    %p289 = scmp.ne.s32.totalorder %s272, %s288
    %p290 = scmp.eq.s32.totalorder %s23, 0
    %p291 = por %p289, %p290
    %p292 = scmp.le.s32.totalorder 1, %s17
    %p293 = scmp.lt.s32.totalorder %s17, 3
    %p294 = pnand %p292, %p293
    %p295 = pneg %p294
    // Predicated region
    $region9: #{imc_forward.1} parent=5 // pred_check
      _
    $region10: #{imc_forward.1} parent=5 // pred_check_branch
      %297 = sbr.rel (%p294) target = $region12
    $region11: #{imc_forward.1} parent=5 // pred_region
      %s298 = ssub.s32 %s17, 1
      // Predicated region
      $region13: #{imc_forward.1} parent=11 // pred_check
        %p299 = pneg %p90
      $region14: #{imc_forward.1} parent=11 // pred_check_branch
        %301 = sbr.rel (%p299) target = $region16
      $region15: #{imc_forward.1} parent=11 // pred_region
        _
      $region16: #{imc_forward.1} parent=11 // pred_fallthru
        _
      // Predicated region
      $region17: #{imc_forward.1} parent=11 // pred_check
        %p302 = pneg %p111
      $region18: #{imc_forward.1} parent=11 // pred_check_branch
        %304 = sbr.rel (%p302) target = $region20
      $region19: #{imc_forward.1} parent=11 // pred_region
        _
      $region20: #{imc_forward.1} parent=11 // pred_fallthru
        _
      // Predicated region
      $region21: #{imc_forward.1} parent=11 // pred_check
        %p305 = pneg %p132
      $region22: #{imc_forward.1} parent=11 // pred_check_branch
        %307 = sbr.rel (%p305) target = $region24
      $region23: #{imc_forward.1} parent=11 // pred_region
        _
      $region24: #{imc_forward.1} parent=11 // pred_fallthru
        _
      // Predicated region
      $region25: #{imc_forward.1} parent=11 // pred_check
        %p308 = pneg %p153
      $region26: #{imc_forward.1} parent=11 // pred_check_branch
        %310 = sbr.rel (%p308) target = $region28
      $region27: #{imc_forward.1} parent=11 // pred_region
        _
      $region28: #{imc_forward.1} parent=11 // pred_fallthru
        _
      // Predicated region
      $region29: #{imc_forward.1} parent=11 // pred_check
        %p311 = pneg %p174
      $region30: #{imc_forward.1} parent=11 // pred_check_branch
        %313 = sbr.rel (%p311) target = $region32
      $region31: #{imc_forward.1} parent=11 // pred_region
        _
      $region32: #{imc_forward.1} parent=11 // pred_fallthru
        _
      // Predicated region
      $region33: #{imc_forward.1} parent=11 // pred_check
        %p314 = pneg %p195
      $region34: #{imc_forward.1} parent=11 // pred_check_branch
        %316 = sbr.rel (%p314) target = $region36
      $region35: #{imc_forward.1} parent=11 // pred_region
        _
      $region36: #{imc_forward.1} parent=11 // pred_fallthru
        _
      // Predicated region
      $region37: #{imc_forward.1} parent=11 // pred_check
        %p317 = pneg %p216
      $region38: #{imc_forward.1} parent=11 // pred_check_branch
        %319 = sbr.rel (%p317) target = $region40
      $region39: #{imc_forward.1} parent=11 // pred_region
        _
      $region40: #{imc_forward.1} parent=11 // pred_fallthru
        _
      // Predicated region
      $region41: #{imc_forward.1} parent=11 // pred_check
        %p320 = pneg %p237
      $region42: #{imc_forward.1} parent=11 // pred_check_branch
        %322 = sbr.rel (%p320) target = $region44
      $region43: #{imc_forward.1} parent=11 // pred_region
        _
      $region44: #{imc_forward.1} parent=11 // pred_fallthru
        _
      // Predicated region
      $region45: #{imc_forward.1} parent=11 // pred_check
        %p323 = pneg %p258
      $region46: #{imc_forward.1} parent=11 // pred_check_branch
        %325 = sbr.rel (%p323) target = $region48
      $region47: #{imc_forward.1} parent=11 // pred_region
        _
      $region48: #{imc_forward.1} parent=11 // pred_fallthru
        _
    $region12: #{imc_forward.1} parent=5 // pred_fallthru
      _
    %p326 = scmp.lt.s32.totalorder %s17, 2
    // Predicated region
    $region49: #{imc_forward.1} parent=5 // pred_check
      %p327 = pneg %p326
    $region50: #{imc_forward.1} parent=5 // pred_check_branch
      %329 = sbr.rel (%p327) target = $region52
    $region51: #{imc_forward.1} parent=5 // pred_region
      // Predicated region
      $region53: #{imc_forward.1} parent=51 // pred_check
        %p330 = pneg %p37
      $region54: #{imc_forward.1} parent=51 // pred_check_branch
        %332 = sbr.rel (%p330) target = $region56
      $region55: #{imc_forward.1} parent=51 // pred_region
        %s333 = smul.u32 32, %s17
        %p334 = scmp.lt.s32.totalorder %s333, 63
        %s335 = scalar_select %p334, %s333, 63
        %s336 = smul.addr %s335, 3
        %s337 = smul.addr %s336, 8
        %s338 = scalar_lea.vmem %s0, %s337
        %s339 = smul.u32 32, %s17
      $region56: #{imc_forward.1} parent=51 // pred_fallthru
        _
      // Predicated region
      $region57: #{imc_forward.1} parent=51 // pred_check
        %p340 = pneg %p63
      $region58: #{imc_forward.1} parent=51 // pred_check_branch
        %342 = sbr.rel (%p340) target = $region60
      $region59: #{imc_forward.1} parent=51 // pred_region
        %s343 = smul.u32 32, %s17
        %p344 = scmp.lt.s32.totalorder %s343, 63
        %s345 = scalar_select %p344, %s343, 63
        %s346 = smul.addr %s345, 2
        %s347 = smul.addr %s346, 8
        %s348 = scalar_lea.vmem %s1, %s347
        %s349 = smul.u32 32, %s17
      $region60: #{imc_forward.1} parent=51 // pred_fallthru
        _
    $region52: #{imc_forward.1} parent=5 // pred_fallthru
      _
    %p350 = scmp.le.s32.totalorder 1, %s17
    %p351 = scmp.lt.s32.totalorder %s17, 3
    %p352 = pnand %p350, %p351
    %p353 = pneg %p352
    // Predicated region
    $region61: #{imc_forward.1} parent=5 // pred_check
      _
    $region62: #{imc_forward.1} parent=5 // pred_check_branch
      %355 = sbr.rel (%p352) target = $region64
    $region63: #{imc_forward.1} parent=5 // pred_region
      %s356 = ssub.s32 %s17, 1
      %s357 = smul.u32 32, %s22
      %p358 = scmp.lt.s32.totalorder %s357, 63
      %s359 = scalar_select %p358, %s357, 63
      %s360 = smul.addr %s359, 3
      %s361 = smul.addr %s360, 8
      %s362 = scalar_lea.vmem %s0, %s361
      %p363 = pneg %p43
      %p364 = pneg %p40
      %s365 = smul.u32 32, %s22
      %p366 = scmp.lt.s32.totalorder %s365, 63
      %s367 = scalar_select %p366, %s365, 63
      %s368 = smul.addr %s367, 2
      %s369 = smul.addr %s368, 8
      %s370 = scalar_lea.vmem %s1, %s369
      %p371 = pneg %p69
      %p372 = pneg %p66
      %p373 = pneg %p90
      %p374 = pneg %p87
      %p375 = pneg %p111
      %p376 = pneg %p108
      %p377 = pneg %p132
      %p378 = pneg %p129
      %p379 = pneg %p153
      %p380 = pneg %p150
      %p381 = pneg %p174
      %p382 = pneg %p171
      %p383 = pneg %p195
      %p384 = pneg %p192
      %p385 = pneg %p216
      %p386 = pneg %p213
      %p387 = pneg %p237
      %p388 = pneg %p234
      %p389 = pneg %p258
      %p390 = pneg %p255
      %p391 = pneg %p284
      %p392 = pneg %p281
      %s393 = smul.u32 2, %s22
      %p394 = scmp.lt.s32.totalorder %s393, 3
      %s395 = scalar_select %p394, %s393, 3
      %s396 = scalar_lea.vmem %s11, %s395
      %s397 = smul.u32 32, %s22
      %p398 = scmp.lt.s32.totalorder %s397, 63
      %s399 = scalar_select %p398, %s397, 63
      %s400 = smul.addr %s399, 3
      %s401 = smul.addr %s400, 8
      %s402 = scalar_lea.vmem %s0, %s401
      %s403 = smul.u32 32, %s22
      %s404 = smul.u32 32, %s22
      %p405 = scmp.lt.s32.totalorder %s404, 63
      %s406 = scalar_select %p405, %s404, 63
      %s407 = smul.addr %s406, 2
      %s408 = smul.addr %s407, 8
      %s409 = scalar_lea.vmem %s1, %s408
      %s410 = smul.u32 32, %s22
      %s411 = smul.u32 2, %s22
      %p412 = scmp.lt.s32.totalorder %s411, 3
      %s413 = scalar_select %p412, %s411, 3
      %s414 = scalar_lea.vmem %s11, %s413
      %s415 = smul.u32 2, %s22
      %v417 = vld [vmem:[%s402] sm:$0xff]
      %v418 = vld [vmem:[%s402 + $0x8] sm:$0xff]
      %v419 = vld [vmem:[%s402 + $0x10] sm:$0xff]
      %v420 = vld [vmem:[%s402 + $0x18] sm:$0xff]
      %v421 = vld [vmem:[%s402 + $0x20] sm:$0xff]
      %v422 = vld [vmem:[%s402 + $0x28] sm:$0xff]
      %v423 = vld [vmem:[%s402 + $0x30] sm:$0xff]
      %v424 = vld [vmem:[%s402 + $0x38] sm:$0xff]
      %v425 = vld [vmem:[%s402 + $0x40] sm:$0xff]
      %v426 = vld [vmem:[%s402 + $0x48] sm:$0xff]
      %v427 = vld [vmem:[%s402 + $0x50] sm:$0xff]
      %v428 = vld [vmem:[%s402 + $0x58] sm:$0xff]
      %v429 = vld [vmem:[%s402 + $0x60] sm:$0xff]
      %v430 = vld [vmem:[%s402 + $0x68] sm:$0xff]
      %v431 = vld [vmem:[%s402 + $0x70] sm:$0xff]
      %v432 = vld [vmem:[%s402 + $0x78] sm:$0xff]
      %v433 = vld [vmem:[%s402 + $0x80] sm:$0xff]
      %v434 = vld [vmem:[%s402 + $0x88] sm:$0xff]
      %v435 = vld [vmem:[%s402 + $0x90] sm:$0xff]
      %v436 = vld [vmem:[%s402 + $0x98] sm:$0xff]
      %v437 = vld [vmem:[%s402 + $0xa0] sm:$0xff]
      %v438 = vld [vmem:[%s402 + $0xa8] sm:$0xff]
      %v439 = vld [vmem:[%s402 + $0xb0] sm:$0xff]
      %v440 = vld [vmem:[%s402 + $0xb8] sm:$0xff]
      %v441 = vld [vmem:[%s402 + $0xc0] sm:$0xff]
      %v442 = vld [vmem:[%s402 + $0xc8] sm:$0xff]
      %v443 = vld [vmem:[%s402 + $0xd0] sm:$0xff]
      %v444 = vld [vmem:[%s402 + $0xd8] sm:$0xff]
      %v445 = vld [vmem:[%s402 + $0xe0] sm:$0xff]
      %v446 = vld [vmem:[%s402 + $0xe8] sm:$0xff]
      %v447 = vld [vmem:[%s402 + $0xf0] sm:$0xff]
      %v448 = vld [vmem:[%s402 + $0xf8] sm:$0xff]
      %v449 = vld [vmem:[%s402 + $0x100] sm:$0xff]
      %v450 = vld [vmem:[%s402 + $0x108] sm:$0xff]
      %v451 = vld [vmem:[%s402 + $0x110] sm:$0xff]
      %v452 = vld [vmem:[%s402 + $0x118] sm:$0xff]
      %v453 = vld [vmem:[%s402 + $0x120] sm:$0xff]
      %v454 = vld [vmem:[%s402 + $0x128] sm:$0xff]
      %v455 = vld [vmem:[%s402 + $0x130] sm:$0xff]
      %v456 = vld [vmem:[%s402 + $0x138] sm:$0xff]
      %v457 = vld [vmem:[%s402 + $0x140] sm:$0xff]
      %v458 = vld [vmem:[%s402 + $0x148] sm:$0xff]
      %v459 = vld [vmem:[%s402 + $0x150] sm:$0xff]
      %v460 = vld [vmem:[%s402 + $0x158] sm:$0xff]
      %v461 = vld [vmem:[%s402 + $0x160] sm:$0xff]
      %v462 = vld [vmem:[%s402 + $0x168] sm:$0xff]
      %v463 = vld [vmem:[%s402 + $0x170] sm:$0xff]
      %v464 = vld [vmem:[%s402 + $0x178] sm:$0xff]
      %v465 = vld [vmem:[%s402 + $0x180] sm:$0xff]
      %v466 = vld [vmem:[%s402 + $0x188] sm:$0xff]
      %v467 = vld [vmem:[%s402 + $0x190] sm:$0xff]
      %v468 = vld [vmem:[%s402 + $0x198] sm:$0xff]
      %v469 = vld [vmem:[%s402 + $0x1a0] sm:$0xff]
      %v470 = vld [vmem:[%s402 + $0x1a8] sm:$0xff]
      %v471 = vld [vmem:[%s402 + $0x1b0] sm:$0xff]
      %v472 = vld [vmem:[%s402 + $0x1b8] sm:$0xff]
      %v473 = vld [vmem:[%s402 + $0x1c0] sm:$0xff]
      %v474 = vld [vmem:[%s402 + $0x1c8] sm:$0xff]
      %v475 = vld [vmem:[%s402 + $0x1d0] sm:$0xff]
      %v476 = vld [vmem:[%s402 + $0x1d8] sm:$0xff]
      %v477 = vld [vmem:[%s402 + $0x1e0] sm:$0xff]
      %v478 = vld [vmem:[%s402 + $0x1e8] sm:$0xff]
      %v479 = vld [vmem:[%s402 + $0x1f0] sm:$0xff]
      %v480 = vld [vmem:[%s402 + $0x1f8] sm:$0xff]
      %v481 = vld [vmem:[%s402 + $0x200] sm:$0xff]
      %v482 = vld [vmem:[%s402 + $0x208] sm:$0xff]
      %v483 = vld [vmem:[%s402 + $0x210] sm:$0xff]
      %v484 = vld [vmem:[%s402 + $0x218] sm:$0xff]
      %v485 = vld [vmem:[%s402 + $0x220] sm:$0xff]
      %v486 = vld [vmem:[%s402 + $0x228] sm:$0xff]
      %v487 = vld [vmem:[%s402 + $0x230] sm:$0xff]
      %v488 = vld [vmem:[%s402 + $0x238] sm:$0xff]
      %v489 = vld [vmem:[%s402 + $0x240] sm:$0xff]
      %v490 = vld [vmem:[%s402 + $0x248] sm:$0xff]
      %v491 = vld [vmem:[%s402 + $0x250] sm:$0xff]
      %v492 = vld [vmem:[%s402 + $0x258] sm:$0xff]
      %v493 = vld [vmem:[%s402 + $0x260] sm:$0xff]
      %v494 = vld [vmem:[%s402 + $0x268] sm:$0xff]
      %v495 = vld [vmem:[%s402 + $0x270] sm:$0xff]
      %v496 = vld [vmem:[%s402 + $0x278] sm:$0xff]
      %v497 = vld [vmem:[%s402 + $0x280] sm:$0xff]
      %v498 = vld [vmem:[%s402 + $0x288] sm:$0xff]
      %v499 = vld [vmem:[%s402 + $0x290] sm:$0xff]
      %v500 = vld [vmem:[%s402 + $0x298] sm:$0xff]
      %v501 = vld [vmem:[%s402 + $0x2a0] sm:$0xff]
      %v502 = vld [vmem:[%s402 + $0x2a8] sm:$0xff]
      %v503 = vld [vmem:[%s402 + $0x2b0] sm:$0xff]
      %v504 = vld [vmem:[%s402 + $0x2b8] sm:$0xff]
      %v505 = vld [vmem:[%s402 + $0x2c0] sm:$0xff]
      %v506 = vld [vmem:[%s402 + $0x2c8] sm:$0xff]
      %v507 = vld [vmem:[%s402 + $0x2d0] sm:$0xff]
      %v508 = vld [vmem:[%s402 + $0x2d8] sm:$0xff]
      %v509 = vld [vmem:[%s402 + $0x2e0] sm:$0xff]
      %v510 = vld [vmem:[%s402 + $0x2e8] sm:$0xff]
      %v511 = vld [vmem:[%s402 + $0x2f0] sm:$0xff]
      %v512 = vld [vmem:[%s402 + $0x2f8] sm:$0xff]
      %v513 = vpack.c.bf16 %v420, %v417
      %v514 = vpack.c.bf16 %v421, %v418
      %v515 = vpack.c.bf16 %v422, %v419
      %v516 = vpack.c.bf16 %v426, %v423
      %v517 = vpack.c.bf16 %v427, %v424
      %v518 = vpack.c.bf16 %v428, %v425
      %v519 = vpack.c.bf16 %v432, %v429
      %v520 = vpack.c.bf16 %v433, %v430
      %v521 = vpack.c.bf16 %v434, %v431
      %v522 = vpack.c.bf16 %v438, %v435
      %v523 = vpack.c.bf16 %v439, %v436
      %v524 = vpack.c.bf16 %v440, %v437
      %v525 = vpack.c.bf16 %v444, %v441
      %v526 = vpack.c.bf16 %v445, %v442
      %v527 = vpack.c.bf16 %v446, %v443
      %v528 = vpack.c.bf16 %v450, %v447
      %v529 = vpack.c.bf16 %v451, %v448
      %v530 = vpack.c.bf16 %v452, %v449
      %v531 = vpack.c.bf16 %v456, %v453
      %v532 = vpack.c.bf16 %v457, %v454
      %v533 = vpack.c.bf16 %v458, %v455
      %v534 = vpack.c.bf16 %v462, %v459
      %v535 = vpack.c.bf16 %v463, %v460
      %v536 = vpack.c.bf16 %v464, %v461
      %v537 = vpack.c.bf16 %v468, %v465
      %v538 = vpack.c.bf16 %v469, %v466
      %v539 = vpack.c.bf16 %v470, %v467
      %v540 = vpack.c.bf16 %v474, %v471
      %v541 = vpack.c.bf16 %v475, %v472
      %v542 = vpack.c.bf16 %v476, %v473
      %v543 = vpack.c.bf16 %v480, %v477
      %v544 = vpack.c.bf16 %v481, %v478
      %v545 = vpack.c.bf16 %v482, %v479
      %v546 = vpack.c.bf16 %v486, %v483
      %v547 = vpack.c.bf16 %v487, %v484
      %v548 = vpack.c.bf16 %v488, %v485
      %v549 = vpack.c.bf16 %v492, %v489
      %v550 = vpack.c.bf16 %v493, %v490
      %v551 = vpack.c.bf16 %v494, %v491
      %v552 = vpack.c.bf16 %v498, %v495
      %v553 = vpack.c.bf16 %v499, %v496
      %v554 = vpack.c.bf16 %v500, %v497
      %v555 = vpack.c.bf16 %v504, %v501
      %v556 = vpack.c.bf16 %v505, %v502
      %v557 = vpack.c.bf16 %v506, %v503
      %v558 = vpack.c.bf16 %v510, %v507
      %v559 = vpack.c.bf16 %v511, %v508
      %v560 = vpack.c.bf16 %v512, %v509
      %v561 = vld [vmem:[%s409] sm:$0xff]
      %v562 = vld [vmem:[%s409 + $0x8] sm:$0xff]
      %v563 = vld [vmem:[%s409 + $0x10] sm:$0xff]
      %v564 = vld [vmem:[%s409 + $0x18] sm:$0xff]
      %v565 = vld [vmem:[%s409 + $0x20] sm:$0xff]
      %v566 = vld [vmem:[%s409 + $0x28] sm:$0xff]
      %v567 = vld [vmem:[%s409 + $0x30] sm:$0xff]
      %v568 = vld [vmem:[%s409 + $0x38] sm:$0xff]
      %v569 = vld [vmem:[%s409 + $0x40] sm:$0xff]
      %v570 = vld [vmem:[%s409 + $0x48] sm:$0xff]
      %v571 = vld [vmem:[%s409 + $0x50] sm:$0xff]
      %v572 = vld [vmem:[%s409 + $0x58] sm:$0xff]
      %v573 = vld [vmem:[%s409 + $0x60] sm:$0xff]
      %v574 = vld [vmem:[%s409 + $0x68] sm:$0xff]
      %v575 = vld [vmem:[%s409 + $0x70] sm:$0xff]
      %v576 = vld [vmem:[%s409 + $0x78] sm:$0xff]
      %v577 = vld [vmem:[%s409 + $0x80] sm:$0xff]
      %v578 = vld [vmem:[%s409 + $0x88] sm:$0xff]
      %v579 = vld [vmem:[%s409 + $0x90] sm:$0xff]
      %v580 = vld [vmem:[%s409 + $0x98] sm:$0xff]
      %v581 = vld [vmem:[%s409 + $0xa0] sm:$0xff]
      %v582 = vld [vmem:[%s409 + $0xa8] sm:$0xff]
      %v583 = vld [vmem:[%s409 + $0xb0] sm:$0xff]
      %v584 = vld [vmem:[%s409 + $0xb8] sm:$0xff]
      %v585 = vld [vmem:[%s409 + $0xc0] sm:$0xff]
      %v586 = vld [vmem:[%s409 + $0xc8] sm:$0xff]
      %v587 = vld [vmem:[%s409 + $0xd0] sm:$0xff]
      %v588 = vld [vmem:[%s409 + $0xd8] sm:$0xff]
      %v589 = vld [vmem:[%s409 + $0xe0] sm:$0xff]
      %v590 = vld [vmem:[%s409 + $0xe8] sm:$0xff]
      %v591 = vld [vmem:[%s409 + $0xf0] sm:$0xff]
      %v592 = vld [vmem:[%s409 + $0xf8] sm:$0xff]
      %v593 = vld [vmem:[%s409 + $0x100] sm:$0xff]
      %v594 = vld [vmem:[%s409 + $0x108] sm:$0xff]
      %v595 = vld [vmem:[%s409 + $0x110] sm:$0xff]
      %v596 = vld [vmem:[%s409 + $0x118] sm:$0xff]
      %v597 = vld [vmem:[%s409 + $0x120] sm:$0xff]
      %v598 = vld [vmem:[%s409 + $0x128] sm:$0xff]
      %v599 = vld [vmem:[%s409 + $0x130] sm:$0xff]
      %v600 = vld [vmem:[%s409 + $0x138] sm:$0xff]
      %v601 = vld [vmem:[%s409 + $0x140] sm:$0xff]
      %v602 = vld [vmem:[%s409 + $0x148] sm:$0xff]
      %v603 = vld [vmem:[%s409 + $0x150] sm:$0xff]
      %v604 = vld [vmem:[%s409 + $0x158] sm:$0xff]
      %v605 = vld [vmem:[%s409 + $0x160] sm:$0xff]
      %v606 = vld [vmem:[%s409 + $0x168] sm:$0xff]
      %v607 = vld [vmem:[%s409 + $0x170] sm:$0xff]
      %v608 = vld [vmem:[%s409 + $0x178] sm:$0xff]
      %v609 = vld [vmem:[%s409 + $0x180] sm:$0xff]
      %v610 = vld [vmem:[%s409 + $0x188] sm:$0xff]
      %v611 = vld [vmem:[%s409 + $0x190] sm:$0xff]
      %v612 = vld [vmem:[%s409 + $0x198] sm:$0xff]
      %v613 = vld [vmem:[%s409 + $0x1a0] sm:$0xff]
      %v614 = vld [vmem:[%s409 + $0x1a8] sm:$0xff]
      %v615 = vld [vmem:[%s409 + $0x1b0] sm:$0xff]
      %v616 = vld [vmem:[%s409 + $0x1b8] sm:$0xff]
      %v617 = vld [vmem:[%s409 + $0x1c0] sm:$0xff]
      %v618 = vld [vmem:[%s409 + $0x1c8] sm:$0xff]
      %v619 = vld [vmem:[%s409 + $0x1d0] sm:$0xff]
      %v620 = vld [vmem:[%s409 + $0x1d8] sm:$0xff]
      %v621 = vld [vmem:[%s409 + $0x1e0] sm:$0xff]
      %v622 = vld [vmem:[%s409 + $0x1e8] sm:$0xff]
      %v623 = vld [vmem:[%s409 + $0x1f0] sm:$0xff]
      %v624 = vld [vmem:[%s409 + $0x1f8] sm:$0xff]
      %v625 = vpack.c.bf16 %v563, %v561
      %v626 = vpack.c.bf16 %v564, %v562
      %v627 = vpack.c.bf16 %v567, %v565
      %v628 = vpack.c.bf16 %v568, %v566
      %v629 = vpack.c.bf16 %v571, %v569
      %v630 = vpack.c.bf16 %v572, %v570
      %v631 = vpack.c.bf16 %v575, %v573
      %v632 = vpack.c.bf16 %v576, %v574
      %v633 = vpack.c.bf16 %v579, %v577
      %v634 = vpack.c.bf16 %v580, %v578
      %v635 = vpack.c.bf16 %v583, %v581
      %v636 = vpack.c.bf16 %v584, %v582
      %v637 = vpack.c.bf16 %v587, %v585
      %v638 = vpack.c.bf16 %v588, %v586
      %v639 = vpack.c.bf16 %v591, %v589
      %v640 = vpack.c.bf16 %v592, %v590
      %v641 = vpack.c.bf16 %v595, %v593
      %v642 = vpack.c.bf16 %v596, %v594
      %v643 = vpack.c.bf16 %v599, %v597
      %v644 = vpack.c.bf16 %v600, %v598
      %v645 = vpack.c.bf16 %v603, %v601
      %v646 = vpack.c.bf16 %v604, %v602
      %v647 = vpack.c.bf16 %v607, %v605
      %v648 = vpack.c.bf16 %v608, %v606
      %v649 = vpack.c.bf16 %v611, %v609
      %v650 = vpack.c.bf16 %v612, %v610
      %v651 = vpack.c.bf16 %v615, %v613
      %v652 = vpack.c.bf16 %v616, %v614
      %v653 = vpack.c.bf16 %v619, %v617
      %v654 = vpack.c.bf16 %v620, %v618
      %v655 = vpack.c.bf16 %v623, %v621
      %v656 = vpack.c.bf16 %v624, %v622
      %v657 = vld [vmem:[%s2] sm:$0xf]
      %v658 = vld [vmem:[%s2 + $0x4] sm:$0xf]
      %v659 = vld [vmem:[%s2 + $0x8] sm:$0xf]
      %v660 = vld [vmem:[%s2 + $0xc] sm:$0xf]
      %v661 = vld [vmem:[%s2 + $0x10] sm:$0xf]
      %v662 = vld [vmem:[%s2 + $0x14] sm:$0xf]
      %v663 = vld [vmem:[%s2 + $0x18] sm:$0xf]
      %v664 = vld [vmem:[%s2 + $0x1c] sm:$0xf]
      %v665 = vld [vmem:[%s2 + $0x20] sm:$0xf]
      %v666 = vld [vmem:[%s2 + $0x24] sm:$0xf]
      %v667 = vld [vmem:[%s2 + $0x28] sm:$0xf]
      %v668 = vld [vmem:[%s2 + $0x2c] sm:$0xf]
      %v669 = vld [vmem:[%s2 + $0x30] sm:$0xf]
      %v670 = vld [vmem:[%s2 + $0x34] sm:$0xf]
      %v671 = vld [vmem:[%s2 + $0x38] sm:$0xf]
      %v672 = vld [vmem:[%s2 + $0x3c] sm:$0xf]
      %v673 = vld [vmem:[%s2 + $0x40] sm:$0xf]
      %v674 = vld [vmem:[%s2 + $0x44] sm:$0xf]
      %v675 = vld [vmem:[%s2 + $0x48] sm:$0xf]
      %v676 = vld [vmem:[%s2 + $0x4c] sm:$0xf]
      %v677 = vld [vmem:[%s2 + $0x50] sm:$0xf]
      %v678 = vld [vmem:[%s2 + $0x54] sm:$0xf]
      %v679 = vld [vmem:[%s2 + $0x58] sm:$0xf]
      %v680 = vld [vmem:[%s2 + $0x5c] sm:$0xf]
      %v681 = vld [vmem:[%s2 + $0x60] sm:$0xf]
      %v682 = vld [vmem:[%s2 + $0x64] sm:$0xf]
      %v683 = vld [vmem:[%s2 + $0x68] sm:$0xf]
      %v684 = vld [vmem:[%s2 + $0x6c] sm:$0xf]
      %v685 = vld [vmem:[%s2 + $0x70] sm:$0xf]
      %v686 = vld [vmem:[%s2 + $0x74] sm:$0xf]
      %v687 = vld [vmem:[%s2 + $0x78] sm:$0xf]
      %v688 = vld [vmem:[%s2 + $0x7c] sm:$0xf]
      %v689 = vld [vmem:[%s2 + $0x80] sm:$0xf]
      %v690 = vld [vmem:[%s2 + $0x84] sm:$0xf]
      %v691 = vld [vmem:[%s2 + $0x88] sm:$0xf]
      %v692 = vld [vmem:[%s2 + $0x8c] sm:$0xf]
      %v693 = vld [vmem:[%s2 + $0x90] sm:$0xf]
      %v694 = vld [vmem:[%s2 + $0x94] sm:$0xf]
      %v695 = vld [vmem:[%s2 + $0x98] sm:$0xf]
      %v696 = vld [vmem:[%s2 + $0x9c] sm:$0xf]
      %v697 = vld [vmem:[%s2 + $0xa0] sm:$0xf]
      %v698 = vld [vmem:[%s2 + $0xa4] sm:$0xf]
      %v699 = vld [vmem:[%s2 + $0xa8] sm:$0xf]
      %v743 = vunpack.c.l.b16 %v657
      %v744 = vunpack.c.l.b16 %v658
      %v745 = vunpack.c.l.b16 %v659
      %v746 = vunpack.c.l.b16 %v660
      %v747 = vunpack.c.l.b16 %v661
      %v748 = vunpack.c.l.b16 %v662
      %v749 = vunpack.c.l.b16 %v663
      %v750 = vunpack.c.l.b16 %v664
      %v751 = vunpack.c.l.b16 %v665
      %v752 = vunpack.c.l.b16 %v666
      %v753 = vunpack.c.l.b16 %v667
      %v754 = vunpack.c.l.b16 %v668
      %v755 = vunpack.c.l.b16 %v669
      %v756 = vunpack.c.l.b16 %v670
      %v757 = vunpack.c.l.b16 %v671
      %v758 = vunpack.c.l.b16 %v672
      %v759 = vunpack.c.l.b16 %v673
      %v760 = vunpack.c.l.b16 %v674
      %v761 = vunpack.c.l.b16 %v675
      %v762 = vunpack.c.l.b16 %v676
      %v763 = vunpack.c.l.b16 %v677
      %v764 = vunpack.c.l.b16 %v678
      %v765 = vunpack.c.l.b16 %v679
      %v766 = vunpack.c.l.b16 %v680
      %v767 = vunpack.c.l.b16 %v681
      %v768 = vunpack.c.l.b16 %v682
      %v769 = vunpack.c.l.b16 %v683
      %v770 = vunpack.c.l.b16 %v684
      %v771 = vunpack.c.l.b16 %v685
      %v772 = vunpack.c.l.b16 %v686
      %v773 = vunpack.c.l.b16 %v687
      %v774 = vunpack.c.l.b16 %v688
      %v775 = vunpack.c.l.b16 %v689
      %v776 = vunpack.c.l.b16 %v690
      %v777 = vunpack.c.l.b16 %v691
      %v778 = vunpack.c.l.b16 %v692
      %v779 = vunpack.c.l.b16 %v693
      %v780 = vunpack.c.l.b16 %v694
      %v781 = vunpack.c.l.b16 %v695
      %v782 = vunpack.c.l.b16 %v696
      %v783 = vunpack.c.l.b16 %v697
      %v784 = vunpack.c.l.b16 %v698
      %v785 = vunpack.c.l.b16 %v699
      %v786 = vpack.c.b16 %v744, %v743
      %v787 = vpack.c.b16 %v746, %v745
      %v788 = vpack.c.b16 %v748, %v747
      %v789 = vpack.c.b16 %v750, %v749
      %v790 = vpack.c.b16 %v752, %v751
      %v791 = vpack.c.b16 %v754, %v753
      %v792 = vpack.c.b16 %v756, %v755
      %v793 = vpack.c.b16 %v758, %v757
      %v794 = vpack.c.b16 %v760, %v759
      %v795 = vpack.c.b16 %v762, %v761
      %v796 = vpack.c.b16 %v764, %v763
      %v797 = vpack.c.b16 %v766, %v765
      %v798 = vpack.c.b16 %v768, %v767
      %v799 = vpack.c.b16 %v770, %v769
      %v800 = vpack.c.b16 %v772, %v771
      %v801 = vpack.c.b16 %v774, %v773
      %v802 = vpack.c.b16 %v776, %v775
      %v803 = vpack.c.b16 %v778, %v777
      %v804 = vpack.c.b16 %v780, %v779
      %v805 = vpack.c.b16 %v782, %v781
      %v806 = vpack.c.b16 %v784, %v783
      %v807 = vpack.c.b16 %v785, %v785
      %vm829 = vcmask 711680
      %v831 = vsel %vm829, %v515, 0
      %v834 = vsel %vm829, %v518, 0
      %v837 = vsel %vm829, %v521, 0
      %v840 = vsel %vm829, %v524, 0
      %v843 = vsel %vm829, %v527, 0
      %v846 = vsel %vm829, %v530, 0
      %v849 = vsel %vm829, %v533, 0
      %v852 = vsel %vm829, %v536, 0
      %v855 = vsel %vm829, %v539, 0
      %v858 = vsel %vm829, %v542, 0
      %v861 = vsel %vm829, %v545, 0
      %v864 = vsel %vm829, %v548, 0
      %v867 = vsel %vm829, %v551, 0
      %v870 = vsel %vm829, %v554, 0
      %v873 = vsel %vm829, %v557, 0
      %v876 = vsel %vm829, %v560, 0
      %vm878 = vcmask 1042432
      %vm879 = vcmask 1043456
      %v880 = vsel %vm878, 4294967295, 65535
      %v881 = vsel %vm879, %v880, 0
      %v883 = vand.u32 %v807, %v881
      %885 = vmatprep.subr.bf16.mxu0 0
      %886 = vmatpush1.bf16.msra.mxu0 %v786
      %887 = vmatprep.subr.bf16.mxu0 0
      %888 = vmatpush1.bf16.msra.mxu0 %v787
      %889 = vmatprep.subr.bf16.mxu0 0
      %890 = vmatpush1.bf16.msra.mxu0 %v788
      %891 = vmatprep.subr.bf16.mxu0 0
      %892 = vmatpush1.bf16.msra.mxu0 %v789
      %893 = vmatprep.subr.bf16.mxu0 0
      %894 = vmatpush1.bf16.msra.mxu0 %v790
      %895 = vmatprep.subr.bf16.mxu0 0
      %896 = vmatpush1.bf16.msra.mxu0 %v791
      %897 = vmatprep.subr.bf16.mxu0 0
      %898 = vmatpush1.bf16.msra.mxu0 %v792
      %899 = vmatprep.subr.bf16.mxu0 0
      %900 = vmatpush1.bf16.msra.mxu0 %v793
      %901 = vmatprep.subr.bf16.mxu0 0
      %902 = vmatpush1.bf16.msra.mxu0 %v794
      %903 = vmatprep.subr.bf16.mxu0 0
      %904 = vmatpush1.bf16.msra.mxu0 %v795
      %905 = vmatprep.subr.bf16.mxu0 0
      %906 = vmatpush1.bf16.msra.mxu0 %v796
      %907 = vmatprep.subr.bf16.mxu0 0
      %908 = vmatpush1.bf16.msra.mxu0 %v797
      %909 = vmatprep.subr.bf16.mxu0 0
      %910 = vmatpush1.bf16.msra.mxu0 %v798
      %911 = vmatprep.subr.bf16.mxu0 0
      %912 = vmatpush1.bf16.msra.mxu0 %v799
      %913 = vmatprep.subr.bf16.mxu0 0
      %914 = vmatpush1.bf16.msra.mxu0 %v800
      %915 = vmatprep.subr.bf16.mxu0 0
      %916 = vmatpush1.bf16.msra.mxu0 %v801
      %917 = vmatprep.mubr.bf16.mxu0 %v514
      %918 = vmatmul.mubr.bf16.gmra.mrb[0].mxu0 %v513
      %v919 = vpop.f32.mrb[0].mxu0
      %v920 = vadd.f32 0.0, %v919
      %v921 = vpop.f32.mrb[0].mxu0
      %v922 = vpop.f32.mrb[0].mxu0
      %v923 = vadd.f32 0.0, %v922
      %v924 = vpop.f32.mrb[0].mxu0
      %925 = vmatprep.mubr.bf16.mxu0 %v517
      %926 = vmatmul.mubr.bf16.gmra.mrb[0].mxu0 %v516
      %v927 = vpop.f32.mrb[0].mxu0
      %v928 = vadd.f32 0.0, %v927
      %v929 = vpop.f32.mrb[0].mxu0
      %v930 = vpop.f32.mrb[0].mxu0
      %v931 = vadd.f32 0.0, %v930
      %v932 = vpop.f32.mrb[0].mxu0
      %933 = vmatprep.mubr.bf16.mxu0 %v520
      %934 = vmatmul.mubr.bf16.gmra.mrb[0].mxu0 %v519
      %v935 = vpop.f32.mrb[0].mxu0
      %v936 = vadd.f32 0.0, %v935
      %v937 = vpop.f32.mrb[0].mxu0
      %v938 = vpop.f32.mrb[0].mxu0
      %v939 = vadd.f32 0.0, %v938
      %v940 = vpop.f32.mrb[0].mxu0
      %941 = vmatprep.mubr.bf16.mxu0 %v523
      %942 = vmatmul.mubr.bf16.gmra.mrb[0].mxu0 %v522
      %v943 = vpop.f32.mrb[0].mxu0
      %v944 = vadd.f32 0.0, %v943
      %v945 = vpop.f32.mrb[0].mxu0
      %v946 = vpop.f32.mrb[0].mxu0
      %v947 = vadd.f32 0.0, %v946
      %v948 = vpop.f32.mrb[0].mxu0
      %949 = vmatprep.mubr.bf16.mxu0 %v526
      %950 = vmatmul.mubr.bf16.gmra.mrb[0].mxu0 %v525
      %v951 = vpop.f32.mrb[0].mxu0
      %v952 = vadd.f32 0.0, %v951
      %v953 = vpop.f32.mrb[0].mxu0
      %v954 = vpop.f32.mrb[0].mxu0
      %v955 = vadd.f32 0.0, %v954
      %v956 = vpop.f32.mrb[0].mxu0
      %957 = vmatprep.mubr.bf16.mxu0 %v529
      %958 = vmatmul.mubr.bf16.gmra.mrb[0].mxu0 %v528
      %v959 = vpop.f32.mrb[0].mxu0
      %v960 = vadd.f32 0.0, %v959
      %v961 = vpop.f32.mrb[0].mxu0
      %v962 = vpop.f32.mrb[0].mxu0
      %v963 = vadd.f32 0.0, %v962
      %v964 = vpop.f32.mrb[0].mxu0
      %965 = vmatprep.mubr.bf16.mxu0 %v532
      %966 = vmatmul.mubr.bf16.gmra.mrb[0].mxu0 %v531
      %v967 = vpop.f32.mrb[0].mxu0
      %v968 = vadd.f32 0.0, %v967
      %v969 = vpop.f32.mrb[0].mxu0
      %v970 = vpop.f32.mrb[0].mxu0
      %v971 = vadd.f32 0.0, %v970
      %v972 = vpop.f32.mrb[0].mxu0
      %973 = vmatprep.mubr.bf16.mxu0 %v535
      %974 = vmatmul.mubr.bf16.gmra.mrb[0].mxu0 %v534
      %v975 = vpop.f32.mrb[0].mxu0
      %v976 = vadd.f32 0.0, %v975
      %v977 = vpop.f32.mrb[0].mxu0
      %v978 = vpop.f32.mrb[0].mxu0
      %v979 = vadd.f32 0.0, %v978
      %v980 = vpop.f32.mrb[0].mxu0
      %981 = vmatprep.mubr.bf16.mxu0 %v538
      %982 = vmatmul.mubr.bf16.gmra.mrb[0].mxu0 %v537
      %v983 = vpop.f32.mrb[0].mxu0
      %v984 = vadd.f32 0.0, %v983
      %v985 = vpop.f32.mrb[0].mxu0
      %v986 = vpop.f32.mrb[0].mxu0
      %v987 = vadd.f32 0.0, %v986
      %v988 = vpop.f32.mrb[0].mxu0
      %989 = vmatprep.mubr.bf16.mxu0 %v541
      %990 = vmatmul.mubr.bf16.gmra.mrb[0].mxu0 %v540
      %v991 = vpop.f32.mrb[0].mxu0
      %v992 = vadd.f32 0.0, %v991
      %v993 = vpop.f32.mrb[0].mxu0
      %v994 = vpop.f32.mrb[0].mxu0
      %v995 = vadd.f32 0.0, %v994
      %v996 = vpop.f32.mrb[0].mxu0
      %997 = vmatprep.mubr.bf16.mxu0 %v544
      %998 = vmatmul.mubr.bf16.gmra.mrb[0].mxu0 %v543
      %v999 = vpop.f32.mrb[0].mxu0
      %v1000 = vadd.f32 0.0, %v999
      %v1001 = vpop.f32.mrb[0].mxu0
      %v1002 = vpop.f32.mrb[0].mxu0
      %v1003 = vadd.f32 0.0, %v1002
      %v1004 = vpop.f32.mrb[0].mxu0
      %1005 = vmatprep.mubr.bf16.mxu0 %v547
      %1006 = vmatmul.mubr.bf16.gmra.mrb[0].mxu0 %v546
      %v1007 = vpop.f32.mrb[0].mxu0
      %v1008 = vadd.f32 0.0, %v1007
      %v1009 = vpop.f32.mrb[0].mxu0
      %v1010 = vpop.f32.mrb[0].mxu0
      %v1011 = vadd.f32 0.0, %v1010
      %v1012 = vpop.f32.mrb[0].mxu0
      %1013 = vmatprep.mubr.bf16.mxu0 %v550
      %1014 = vmatmul.mubr.bf16.gmra.mrb[0].mxu0 %v549
      %v1015 = vpop.f32.mrb[0].mxu0
      %v1016 = vadd.f32 0.0, %v1015
      %v1017 = vpop.f32.mrb[0].mxu0
      %v1018 = vpop.f32.mrb[0].mxu0
      %v1019 = vadd.f32 0.0, %v1018
      %v1020 = vpop.f32.mrb[0].mxu0
      %1021 = vmatprep.mubr.bf16.mxu0 %v553
      %1022 = vmatmul.mubr.bf16.gmra.mrb[0].mxu0 %v552
      %v1023 = vpop.f32.mrb[0].mxu0
      %v1024 = vadd.f32 0.0, %v1023
      %v1025 = vpop.f32.mrb[0].mxu0
      %v1026 = vpop.f32.mrb[0].mxu0
      %v1027 = vadd.f32 0.0, %v1026
      %v1028 = vpop.f32.mrb[0].mxu0
      %1029 = vmatprep.mubr.bf16.mxu0 %v556
      %1030 = vmatmul.mubr.bf16.gmra.mrb[0].mxu0 %v555
      %v1031 = vpop.f32.mrb[0].mxu0
      %v1032 = vadd.f32 0.0, %v1031
      %v1033 = vpop.f32.mrb[0].mxu0
      %v1034 = vpop.f32.mrb[0].mxu0
      %v1035 = vadd.f32 0.0, %v1034
      %v1036 = vpop.f32.mrb[0].mxu0
      %1037 = vmatprep.mubr.bf16.mxu0 %v559
      %1038 = vmatmul.mubr.bf16.gmra.mrb[0].mxu0 %v558
      %v1039 = vpop.f32.mrb[0].mxu0
      %v1040 = vadd.f32 0.0, %v1039
      %v1041 = vpop.f32.mrb[0].mxu0
      %v1042 = vpop.f32.mrb[0].mxu0
      %v1043 = vadd.f32 0.0, %v1042
      %v1044 = vpop.f32.mrb[0].mxu0
      %1045 = vdwg.mxu0
      %1046 = vmatprep.subr.bf16.mxu0 0
      %1047 = vmatpush1.bf16.msra.mxu0 %v802
      %1048 = vmatprep.subr.bf16.mxu0 0
      %1049 = vmatpush1.bf16.msra.mxu0 %v803
      %1050 = vmatprep.subr.bf16.mxu0 0
      %1051 = vmatpush1.bf16.msra.mxu0 %v804
      %1052 = vmatprep.subr.bf16.mxu0 0
      %1053 = vmatpush1.bf16.msra.mxu0 %v805
      %1054 = vmatprep.subr.bf16.mxu0 0
      %1055 = vmatpush1.bf16.msra.mxu0 %v806
      %1056 = vmatprep.subr.bf16.mxu0 0
      %1057 = vmatpush1.bf16.msra.mxu0 %v883
      %1058 = vmatprep.subr.bf16.mxu0 0
      %1059 = vmatpush1.bf16.msra.mxu0 0
      %1060 = vmatprep.subr.bf16.mxu0 0
      %1061 = vmatpush1.bf16.msra.mxu0 0
      %1062 = vmatprep.subr.bf16.mxu0 0
      %1063 = vmatpush1.bf16.msra.mxu0 0
      %1064 = vmatprep.subr.bf16.mxu0 0
      %1065 = vmatpush1.bf16.msra.mxu0 0
      %1066 = vmatprep.subr.bf16.mxu0 0
      %1067 = vmatpush1.bf16.msra.mxu0 0
      %1068 = vmatprep.subr.bf16.mxu0 0
      %1069 = vmatpush1.bf16.msra.mxu0 0
      %1070 = vmatprep.subr.bf16.mxu0 0
      %1071 = vmatpush1.bf16.msra.mxu0 0
      %1072 = vmatprep.subr.bf16.mxu0 0
      %1073 = vmatpush1.bf16.msra.mxu0 0
      %1074 = vmatprep.subr.bf16.mxu0 0
      %1075 = vmatpush1.bf16.msra.mxu0 0
      %1076 = vmatprep.subr.bf16.mxu0 0
      %1077 = vmatpush1.bf16.msra.mxu0 0
      %1078 = vmatprep.mubr.bf16.mxu0 0
      %1079 = vmatmul.mubr.bf16.gmra.mrb[0].mxu0 %v831
      %v1080 = vpop.f32.mrb[0].mxu0
      %v1081 = vadd.f32 %v920, %v1080
      %v1082 = vpop.f32.mrb[0].mxu0
      %v1083 = vpop.f32.mrb[0].mxu0
      %v1084 = vadd.f32 %v923, %v1083
      %v1085 = vpop.f32.mrb[0].mxu0
      %1086 = vmatprep.mubr.bf16.mxu0 0
      %1087 = vmatmul.mubr.bf16.gmra.mrb[0].mxu0 %v834
      %v1088 = vpop.f32.mrb[0].mxu0
      %v1089 = vadd.f32 %v928, %v1088
      %v1090 = vpop.f32.mrb[0].mxu0
      %v1091 = vpop.f32.mrb[0].mxu0
      %v1092 = vadd.f32 %v931, %v1091
      %v1093 = vpop.f32.mrb[0].mxu0
      %1094 = vmatprep.mubr.bf16.mxu0 0
      %1095 = vmatmul.mubr.bf16.gmra.mrb[0].mxu0 %v837
      %v1096 = vpop.f32.mrb[0].mxu0
      %v1097 = vadd.f32 %v936, %v1096
      %v1098 = vpop.f32.mrb[0].mxu0
      %v1099 = vpop.f32.mrb[0].mxu0
      %v1100 = vadd.f32 %v939, %v1099
      %v1101 = vpop.f32.mrb[0].mxu0
      %1102 = vmatprep.mubr.bf16.mxu0 0
      %1103 = vmatmul.mubr.bf16.gmra.mrb[0].mxu0 %v840
      %v1104 = vpop.f32.mrb[0].mxu0
      %v1105 = vadd.f32 %v944, %v1104
      %v1106 = vpop.f32.mrb[0].mxu0
      %v1107 = vpop.f32.mrb[0].mxu0
      %v1108 = vadd.f32 %v947, %v1107
      %v1109 = vpop.f32.mrb[0].mxu0
      %1110 = vmatprep.mubr.bf16.mxu0 0
      %1111 = vmatmul.mubr.bf16.gmra.mrb[0].mxu0 %v843
      %v1112 = vpop.f32.mrb[0].mxu0
      %v1113 = vadd.f32 %v952, %v1112
      %v1114 = vpop.f32.mrb[0].mxu0
      %v1115 = vpop.f32.mrb[0].mxu0
      %v1116 = vadd.f32 %v955, %v1115
      %v1117 = vpop.f32.mrb[0].mxu0
      %1118 = vmatprep.mubr.bf16.mxu0 0
      %1119 = vmatmul.mubr.bf16.gmra.mrb[0].mxu0 %v846
      %v1120 = vpop.f32.mrb[0].mxu0
      %v1121 = vadd.f32 %v960, %v1120
      %v1122 = vpop.f32.mrb[0].mxu0
      %v1123 = vpop.f32.mrb[0].mxu0
      %v1124 = vadd.f32 %v963, %v1123
      %v1125 = vpop.f32.mrb[0].mxu0
      %1126 = vmatprep.mubr.bf16.mxu0 0
      %1127 = vmatmul.mubr.bf16.gmra.mrb[0].mxu0 %v849
      %v1128 = vpop.f32.mrb[0].mxu0
      %v1129 = vadd.f32 %v968, %v1128
      %v1130 = vpop.f32.mrb[0].mxu0
      %v1131 = vpop.f32.mrb[0].mxu0
      %v1132 = vadd.f32 %v971, %v1131
      %v1133 = vpop.f32.mrb[0].mxu0
      %1134 = vmatprep.mubr.bf16.mxu0 0
      %1135 = vmatmul.mubr.bf16.gmra.mrb[0].mxu0 %v852
      %v1136 = vpop.f32.mrb[0].mxu0
      %v1137 = vadd.f32 %v976, %v1136
      %v1138 = vpop.f32.mrb[0].mxu0
      %v1139 = vpop.f32.mrb[0].mxu0
      %v1140 = vadd.f32 %v979, %v1139
      %v1141 = vpop.f32.mrb[0].mxu0
      %1142 = vmatprep.mubr.bf16.mxu0 0
      %1143 = vmatmul.mubr.bf16.gmra.mrb[0].mxu0 %v855
      %v1144 = vpop.f32.mrb[0].mxu0
      %v1145 = vadd.f32 %v984, %v1144
      %v1146 = vpop.f32.mrb[0].mxu0
      %v1147 = vpop.f32.mrb[0].mxu0
      %v1148 = vadd.f32 %v987, %v1147
      %v1149 = vpop.f32.mrb[0].mxu0
      %1150 = vmatprep.mubr.bf16.mxu0 0
      %1151 = vmatmul.mubr.bf16.gmra.mrb[0].mxu0 %v858
      %v1152 = vpop.f32.mrb[0].mxu0
      %v1153 = vadd.f32 %v992, %v1152
      %v1154 = vpop.f32.mrb[0].mxu0
      %v1155 = vpop.f32.mrb[0].mxu0
      %v1156 = vadd.f32 %v995, %v1155
      %v1157 = vpop.f32.mrb[0].mxu0
      %1158 = vmatprep.mubr.bf16.mxu0 0
      %1159 = vmatmul.mubr.bf16.gmra.mrb[0].mxu0 %v861
      %v1160 = vpop.f32.mrb[0].mxu0
      %v1161 = vadd.f32 %v1000, %v1160
      %v1162 = vpop.f32.mrb[0].mxu0
      %v1163 = vpop.f32.mrb[0].mxu0
      %v1164 = vadd.f32 %v1003, %v1163
      %v1165 = vpop.f32.mrb[0].mxu0
      %1166 = vmatprep.mubr.bf16.mxu0 0
      %1167 = vmatmul.mubr.bf16.gmra.mrb[0].mxu0 %v864
      %v1168 = vpop.f32.mrb[0].mxu0
      %v1169 = vadd.f32 %v1008, %v1168
      %v1170 = vpop.f32.mrb[0].mxu0
      %v1171 = vpop.f32.mrb[0].mxu0
      %v1172 = vadd.f32 %v1011, %v1171
      %v1173 = vpop.f32.mrb[0].mxu0
      %1174 = vmatprep.mubr.bf16.mxu0 0
      %1175 = vmatmul.mubr.bf16.gmra.mrb[0].mxu0 %v867
      %v1176 = vpop.f32.mrb[0].mxu0
      %v1177 = vadd.f32 %v1016, %v1176
      %v1178 = vpop.f32.mrb[0].mxu0
      %v1179 = vpop.f32.mrb[0].mxu0
      %v1180 = vadd.f32 %v1019, %v1179
      %v1181 = vpop.f32.mrb[0].mxu0
      %1182 = vmatprep.mubr.bf16.mxu0 0
      %1183 = vmatmul.mubr.bf16.gmra.mrb[0].mxu0 %v870
      %v1184 = vpop.f32.mrb[0].mxu0
      %v1185 = vadd.f32 %v1024, %v1184
      %v1186 = vpop.f32.mrb[0].mxu0
      %v1187 = vpop.f32.mrb[0].mxu0
      %v1188 = vadd.f32 %v1027, %v1187
      %v1189 = vpop.f32.mrb[0].mxu0
      %1190 = vmatprep.mubr.bf16.mxu0 0
      %1191 = vmatmul.mubr.bf16.gmra.mrb[0].mxu0 %v873
      %v1192 = vpop.f32.mrb[0].mxu0
      %v1193 = vadd.f32 %v1032, %v1192
      %v1194 = vpop.f32.mrb[0].mxu0
      %v1195 = vpop.f32.mrb[0].mxu0
      %v1196 = vadd.f32 %v1035, %v1195
      %v1197 = vpop.f32.mrb[0].mxu0
      %1198 = vmatprep.mubr.bf16.mxu0 0
      %1199 = vmatmul.mubr.bf16.gmra.mrb[0].mxu0 %v876
      %v1200 = vpop.f32.mrb[0].mxu0
      %v1201 = vadd.f32 %v1040, %v1200
      %v1202 = vpop.f32.mrb[0].mxu0
      %v1203 = vpop.f32.mrb[0].mxu0
      %v1204 = vadd.f32 %v1043, %v1203
      %v1205 = vpop.f32.mrb[0].mxu0
      %1206 = vdwg.mxu0
      %v1207 = vld [vmem:[%s3] sm:$0xf]
      %v1208 = vld [vmem:[%s3 + $0x4] sm:$0xf]
      %v1209 = vld [vmem:[%s3 + $0x8] sm:$0xf]
      %v1210 = vld [vmem:[%s3 + $0xc] sm:$0xf]
      %v1211 = vld [vmem:[%s3 + $0x10] sm:$0xf]
      %v1212 = vld [vmem:[%s3 + $0x14] sm:$0xf]
      %v1213 = vld [vmem:[%s3 + $0x18] sm:$0xf]
      %v1214 = vld [vmem:[%s3 + $0x1c] sm:$0xf]
      %v1215 = vld [vmem:[%s3 + $0x20] sm:$0xf]
      %v1216 = vld [vmem:[%s3 + $0x24] sm:$0xf]
      %v1217 = vld [vmem:[%s3 + $0x28] sm:$0xf]
      %v1218 = vld [vmem:[%s3 + $0x2c] sm:$0xf]
      %v1219 = vld [vmem:[%s3 + $0x30] sm:$0xf]
      %v1220 = vld [vmem:[%s3 + $0x34] sm:$0xf]
      %v1221 = vld [vmem:[%s3 + $0x38] sm:$0xf]
      %v1222 = vld [vmem:[%s3 + $0x3c] sm:$0xf]
      %v1223 = vld [vmem:[%s3 + $0x40] sm:$0xf]
      %v1224 = vld [vmem:[%s3 + $0x44] sm:$0xf]
      %v1225 = vld [vmem:[%s3 + $0x48] sm:$0xf]
      %v1226 = vld [vmem:[%s3 + $0x4c] sm:$0xf]
      %v1227 = vld [vmem:[%s3 + $0x50] sm:$0x7]
      %v1249 = vunpack.c.l.b16 %v1207
      %v1250 = vunpack.c.l.b16 %v1208
      %v1251 = vunpack.c.l.b16 %v1209
      %v1252 = vunpack.c.l.b16 %v1210
      %v1253 = vunpack.c.l.b16 %v1211
      %v1254 = vunpack.c.l.b16 %v1212
      %v1255 = vunpack.c.l.b16 %v1213
      %v1256 = vunpack.c.l.b16 %v1214
      %v1257 = vunpack.c.l.b16 %v1215
      %v1258 = vunpack.c.l.b16 %v1216
      %v1259 = vunpack.c.l.b16 %v1217
      %v1260 = vunpack.c.l.b16 %v1218
      %v1261 = vunpack.c.l.b16 %v1219
      %v1262 = vunpack.c.l.b16 %v1220
      %v1263 = vunpack.c.l.b16 %v1221
      %v1264 = vunpack.c.l.b16 %v1222
      %v1265 = vunpack.c.l.b16 %v1223
      %v1266 = vunpack.c.l.b16 %v1224
      %v1267 = vunpack.c.l.b16 %v1225
      %v1268 = vunpack.c.l.b16 %v1226
      %v1269 = vunpack.c.l.b16 %v1227
      %v1270 = vpack.c.b16 %v1250, %v1249
      %v1271 = vpack.c.b16 %v1252, %v1251
      %v1272 = vpack.c.b16 %v1254, %v1253
      %v1273 = vpack.c.b16 %v1256, %v1255
      %v1274 = vpack.c.b16 %v1258, %v1257
      %v1275 = vpack.c.b16 %v1260, %v1259
      %v1276 = vpack.c.b16 %v1262, %v1261
      %v1277 = vpack.c.b16 %v1264, %v1263
      %v1278 = vpack.c.b16 %v1266, %v1265
      %v1279 = vpack.c.b16 %v1268, %v1267
      %v1280 = vpack.c.b16 %v1269, %v1269
      %vm1291 = vcmask 310272
      %v1293 = vsel %vm1291, %v626, 0
      %v1296 = vsel %vm1291, %v628, 0
      %v1299 = vsel %vm1291, %v630, 0
      %v1302 = vsel %vm1291, %v632, 0
      %v1305 = vsel %vm1291, %v634, 0
      %v1308 = vsel %vm1291, %v636, 0
      %v1311 = vsel %vm1291, %v638, 0
      %v1314 = vsel %vm1291, %v640, 0
      %v1317 = vsel %vm1291, %v642, 0
      %v1320 = vsel %vm1291, %v644, 0
      %v1323 = vsel %vm1291, %v646, 0
      %v1326 = vsel %vm1291, %v648, 0
      %v1329 = vsel %vm1291, %v650, 0
      %v1332 = vsel %vm1291, %v652, 0
      %v1335 = vsel %vm1291, %v654, 0
      %v1338 = vsel %vm1291, %v656, 0
      %v1341 = vsel %vm878, %v1280, 0
      %1343 = vmatprep.subr.bf16.mxu0 0
      %1344 = vmatpush1.bf16.msra.mxu0 %v1270
      %1345 = vmatprep.subr.bf16.mxu0 0
      %1346 = vmatpush1.bf16.msra.mxu0 %v1271
      %1347 = vmatprep.subr.bf16.mxu0 0
      %1348 = vmatpush1.bf16.msra.mxu0 %v1272
      %1349 = vmatprep.subr.bf16.mxu0 0
      %1350 = vmatpush1.bf16.msra.mxu0 %v1273
      %1351 = vmatprep.subr.bf16.mxu0 0
      %1352 = vmatpush1.bf16.msra.mxu0 %v1274
      %1353 = vmatprep.subr.bf16.mxu0 0
      %1354 = vmatpush1.bf16.msra.mxu0 %v1275
      %1355 = vmatprep.subr.bf16.mxu0 0
      %1356 = vmatpush1.bf16.msra.mxu0 %v1276
      %1357 = vmatprep.subr.bf16.mxu0 0
      %1358 = vmatpush1.bf16.msra.mxu0 %v1277
      %1359 = vmatprep.subr.bf16.mxu0 0
      %1360 = vmatpush1.bf16.msra.mxu0 %v1278
      %1361 = vmatprep.subr.bf16.mxu0 0
      %1362 = vmatpush1.bf16.msra.mxu0 %v1279
      %1363 = vmatprep.subr.bf16.mxu0 0
      %1364 = vmatpush1.bf16.msra.mxu0 %v1341
      %1365 = vmatprep.subr.bf16.mxu0 0
      %1366 = vmatpush1.bf16.msra.mxu0 0
      %1367 = vmatprep.subr.bf16.mxu0 0
      %1368 = vmatpush1.bf16.msra.mxu0 0
      %1369 = vmatprep.subr.bf16.mxu0 0
      %1370 = vmatpush1.bf16.msra.mxu0 0
      %1371 = vmatprep.subr.bf16.mxu0 0
      %1372 = vmatpush1.bf16.msra.mxu0 0
      %1373 = vmatprep.subr.bf16.mxu0 0
      %1374 = vmatpush1.bf16.msra.mxu0 0
      %1375 = vmatprep.mubr.bf16.mxu0 %v1293
      %1376 = vmatmul.mubr.bf16.gmra.mrb[0].mxu0 %v625
      %v1377 = vpop.f32.mrb[0].mxu0
      %v1378 = vadd.f32 0.0, %v1377
      %v1379 = vpop.f32.mrb[0].mxu0
      %v1380 = vpop.f32.mrb[0].mxu0
      %v1381 = vadd.f32 0.0, %v1380
      %v1382 = vpop.f32.mrb[0].mxu0
      %1383 = vmatprep.mubr.bf16.mxu0 %v1296
      %1384 = vmatmul.mubr.bf16.gmra.mrb[0].mxu0 %v627
      %v1385 = vpop.f32.mrb[0].mxu0
      %v1386 = vadd.f32 0.0, %v1385
      %v1387 = vpop.f32.mrb[0].mxu0
      %v1388 = vpop.f32.mrb[0].mxu0
      %v1389 = vadd.f32 0.0, %v1388
      %v1390 = vpop.f32.mrb[0].mxu0
      %1391 = vmatprep.mubr.bf16.mxu0 %v1299
      %1392 = vmatmul.mubr.bf16.gmra.mrb[0].mxu0 %v629
      %v1393 = vpop.f32.mrb[0].mxu0
      %v1394 = vadd.f32 0.0, %v1393
      %v1395 = vpop.f32.mrb[0].mxu0
      %v1396 = vpop.f32.mrb[0].mxu0
      %v1397 = vadd.f32 0.0, %v1396
      %v1398 = vpop.f32.mrb[0].mxu0
      %1399 = vmatprep.mubr.bf16.mxu0 %v1302
      %1400 = vmatmul.mubr.bf16.gmra.mrb[0].mxu0 %v631
      %v1401 = vpop.f32.mrb[0].mxu0
      %v1402 = vadd.f32 0.0, %v1401
      %v1403 = vpop.f32.mrb[0].mxu0
      %v1404 = vpop.f32.mrb[0].mxu0
      %v1405 = vadd.f32 0.0, %v1404
      %v1406 = vpop.f32.mrb[0].mxu0
      %1407 = vmatprep.mubr.bf16.mxu0 %v1305
      %1408 = vmatmul.mubr.bf16.gmra.mrb[0].mxu0 %v633
      %v1409 = vpop.f32.mrb[0].mxu0
      %v1410 = vadd.f32 0.0, %v1409
      %v1411 = vpop.f32.mrb[0].mxu0
      %v1412 = vpop.f32.mrb[0].mxu0
      %v1413 = vadd.f32 0.0, %v1412
      %v1414 = vpop.f32.mrb[0].mxu0
      %1415 = vmatprep.mubr.bf16.mxu0 %v1308
      %1416 = vmatmul.mubr.bf16.gmra.mrb[0].mxu0 %v635
      %v1417 = vpop.f32.mrb[0].mxu0
      %v1418 = vadd.f32 0.0, %v1417
      %v1419 = vpop.f32.mrb[0].mxu0
      %v1420 = vpop.f32.mrb[0].mxu0
      %v1421 = vadd.f32 0.0, %v1420
      %v1422 = vpop.f32.mrb[0].mxu0
      %1423 = vmatprep.mubr.bf16.mxu0 %v1311
      %1424 = vmatmul.mubr.bf16.gmra.mrb[0].mxu0 %v637
      %v1425 = vpop.f32.mrb[0].mxu0
      %v1426 = vadd.f32 0.0, %v1425
      %v1427 = vpop.f32.mrb[0].mxu0
      %v1428 = vpop.f32.mrb[0].mxu0
      %v1429 = vadd.f32 0.0, %v1428
      %v1430 = vpop.f32.mrb[0].mxu0
      %1431 = vmatprep.mubr.bf16.mxu0 %v1314
      %1432 = vmatmul.mubr.bf16.gmra.mrb[0].mxu0 %v639
      %v1433 = vpop.f32.mrb[0].mxu0
      %v1434 = vadd.f32 0.0, %v1433
      %v1435 = vpop.f32.mrb[0].mxu0
      %v1436 = vpop.f32.mrb[0].mxu0
      %v1437 = vadd.f32 0.0, %v1436
      %v1438 = vpop.f32.mrb[0].mxu0
      %1439 = vmatprep.mubr.bf16.mxu0 %v1317
      %1440 = vmatmul.mubr.bf16.gmra.mrb[0].mxu0 %v641
      %v1441 = vpop.f32.mrb[0].mxu0
      %v1442 = vadd.f32 0.0, %v1441
      %v1443 = vpop.f32.mrb[0].mxu0
      %v1444 = vpop.f32.mrb[0].mxu0
      %v1445 = vadd.f32 0.0, %v1444
      %v1446 = vpop.f32.mrb[0].mxu0
      %1447 = vmatprep.mubr.bf16.mxu0 %v1320
      %1448 = vmatmul.mubr.bf16.gmra.mrb[0].mxu0 %v643
      %v1449 = vpop.f32.mrb[0].mxu0
      %v1450 = vadd.f32 0.0, %v1449
      %v1451 = vpop.f32.mrb[0].mxu0
      %v1452 = vpop.f32.mrb[0].mxu0
      %v1453 = vadd.f32 0.0, %v1452
      %v1454 = vpop.f32.mrb[0].mxu0
      %1455 = vmatprep.mubr.bf16.mxu0 %v1323
      %1456 = vmatmul.mubr.bf16.gmra.mrb[0].mxu0 %v645
      %v1457 = vpop.f32.mrb[0].mxu0
      %v1458 = vadd.f32 0.0, %v1457
      %v1459 = vpop.f32.mrb[0].mxu0
      %v1460 = vpop.f32.mrb[0].mxu0
      %v1461 = vadd.f32 0.0, %v1460
      %v1462 = vpop.f32.mrb[0].mxu0
      %1463 = vmatprep.mubr.bf16.mxu0 %v1326
      %1464 = vmatmul.mubr.bf16.gmra.mrb[0].mxu0 %v647
      %v1465 = vpop.f32.mrb[0].mxu0
      %v1466 = vadd.f32 0.0, %v1465
      %v1467 = vpop.f32.mrb[0].mxu0
      %v1468 = vpop.f32.mrb[0].mxu0
      %v1469 = vadd.f32 0.0, %v1468
      %v1470 = vpop.f32.mrb[0].mxu0
      %1471 = vmatprep.mubr.bf16.mxu0 %v1329
      %1472 = vmatmul.mubr.bf16.gmra.mrb[0].mxu0 %v649
      %v1473 = vpop.f32.mrb[0].mxu0
      %v1474 = vadd.f32 0.0, %v1473
      %v1475 = vpop.f32.mrb[0].mxu0
      %v1476 = vpop.f32.mrb[0].mxu0
      %v1477 = vadd.f32 0.0, %v1476
      %v1478 = vpop.f32.mrb[0].mxu0
      %1479 = vmatprep.mubr.bf16.mxu0 %v1332
      %1480 = vmatmul.mubr.bf16.gmra.mrb[0].mxu0 %v651
      %v1481 = vpop.f32.mrb[0].mxu0
      %v1482 = vadd.f32 0.0, %v1481
      %v1483 = vpop.f32.mrb[0].mxu0
      %v1484 = vpop.f32.mrb[0].mxu0
      %v1485 = vadd.f32 0.0, %v1484
      %v1486 = vpop.f32.mrb[0].mxu0
      %1487 = vmatprep.mubr.bf16.mxu0 %v1335
      %1488 = vmatmul.mubr.bf16.gmra.mrb[0].mxu0 %v653
      %v1489 = vpop.f32.mrb[0].mxu0
      %v1490 = vadd.f32 0.0, %v1489
      %v1491 = vpop.f32.mrb[0].mxu0
      %v1492 = vpop.f32.mrb[0].mxu0
      %v1493 = vadd.f32 0.0, %v1492
      %v1494 = vpop.f32.mrb[0].mxu0
      %1495 = vmatprep.mubr.bf16.mxu0 %v1338
      %1496 = vmatmul.mubr.bf16.gmra.mrb[0].mxu0 %v655
      %v1497 = vpop.f32.mrb[0].mxu0
      %v1498 = vadd.f32 0.0, %v1497
      %v1499 = vpop.f32.mrb[0].mxu0
      %v1500 = vpop.f32.mrb[0].mxu0
      %v1501 = vadd.f32 0.0, %v1500
      %v1502 = vpop.f32.mrb[0].mxu0
      %1503 = vdwg.mxu0
      %v1504 = vld [vmem:[%s4] sm:$0x3]
      %v1506 = vlaneseq
      %v1507 = vshrl.u32 %v1506, 7
      %v1508 = vsub.s32 0, %v1507
      %v1509 = vrot.slane %v1504, %v1508
      %v1510 = vlaneseq
      %v1511 = vshrl.u32 %v1510, 7
      %v1512 = vsub.s32 1, %v1511
      %v1513 = vrot.slane %v1504, %v1512
      %v1516 = vadd.f32 %v1081, %v1509
      %v1517 = vadd.f32 %v1378, %v1513
      %v1518 = vadd.f32 %v1084, %v1509
      %v1519 = vadd.f32 %v1381, %v1513
      %v1520 = vadd.f32 %v1089, %v1509
      %v1521 = vadd.f32 %v1386, %v1513
      %v1522 = vadd.f32 %v1092, %v1509
      %v1523 = vadd.f32 %v1389, %v1513
      %v1524 = vadd.f32 %v1097, %v1509
      %v1525 = vadd.f32 %v1394, %v1513
      %v1526 = vadd.f32 %v1100, %v1509
      %v1527 = vadd.f32 %v1397, %v1513
      %v1528 = vadd.f32 %v1105, %v1509
      %v1529 = vadd.f32 %v1402, %v1513
      %v1530 = vadd.f32 %v1108, %v1509
      %v1531 = vadd.f32 %v1405, %v1513
      %v1532 = vadd.f32 %v1113, %v1509
      %v1533 = vadd.f32 %v1410, %v1513
      %v1534 = vadd.f32 %v1116, %v1509
      %v1535 = vadd.f32 %v1413, %v1513
      %v1536 = vadd.f32 %v1121, %v1509
      %v1537 = vadd.f32 %v1418, %v1513
      %v1538 = vadd.f32 %v1124, %v1509
      %v1539 = vadd.f32 %v1421, %v1513
      %v1540 = vadd.f32 %v1129, %v1509
      %v1541 = vadd.f32 %v1426, %v1513
      %v1542 = vadd.f32 %v1132, %v1509
      %v1543 = vadd.f32 %v1429, %v1513
      %v1544 = vadd.f32 %v1137, %v1509
      %v1545 = vadd.f32 %v1434, %v1513
      %v1546 = vadd.f32 %v1140, %v1509
      %v1547 = vadd.f32 %v1437, %v1513
      %v1548 = vadd.f32 %v1145, %v1509
      %v1549 = vadd.f32 %v1442, %v1513
      %v1550 = vadd.f32 %v1148, %v1509
      %v1551 = vadd.f32 %v1445, %v1513
      %v1552 = vadd.f32 %v1153, %v1509
      %v1553 = vadd.f32 %v1450, %v1513
      %v1554 = vadd.f32 %v1156, %v1509
      %v1555 = vadd.f32 %v1453, %v1513
      %v1556 = vadd.f32 %v1161, %v1509
      %v1557 = vadd.f32 %v1458, %v1513
      %v1558 = vadd.f32 %v1164, %v1509
      %v1559 = vadd.f32 %v1461, %v1513
      %v1560 = vadd.f32 %v1169, %v1509
      %v1561 = vadd.f32 %v1466, %v1513
      %v1562 = vadd.f32 %v1172, %v1509
      %v1563 = vadd.f32 %v1469, %v1513
      %v1564 = vadd.f32 %v1177, %v1509
      %v1565 = vadd.f32 %v1474, %v1513
      %v1566 = vadd.f32 %v1180, %v1509
      %v1567 = vadd.f32 %v1477, %v1513
      %v1568 = vadd.f32 %v1185, %v1509
      %v1569 = vadd.f32 %v1482, %v1513
      %v1570 = vadd.f32 %v1188, %v1509
      %v1571 = vadd.f32 %v1485, %v1513
      %v1572 = vadd.f32 %v1193, %v1509
      %v1573 = vadd.f32 %v1490, %v1513
      %v1574 = vadd.f32 %v1196, %v1509
      %v1575 = vadd.f32 %v1493, %v1513
      %v1576 = vadd.f32 %v1201, %v1509
      %v1577 = vadd.f32 %v1498, %v1513
      %v1578 = vadd.f32 %v1204, %v1509
      %v1579 = vadd.f32 %v1501, %v1513
      %v1580 = vtanh.pop %v1516
      %v1581 = vtanh.pop %v1517
      %v1582 = vtanh.pop %v1518
      %v1583 = vtanh.pop %v1519
      %v1584 = vtanh.pop %v1520
      %v1585 = vtanh.pop %v1521
      %v1586 = vtanh.pop %v1522
      %v1587 = vtanh.pop %v1523
      %v1588 = vtanh.pop %v1524
      %v1589 = vtanh.pop %v1525
      %v1590 = vtanh.pop %v1526
      %v1591 = vtanh.pop %v1527
      %v1592 = vtanh.pop %v1528
      %v1593 = vtanh.pop %v1529
      %v1594 = vtanh.pop %v1530
      %v1595 = vtanh.pop %v1531
      %v1596 = vtanh.pop %v1532
      %v1597 = vtanh.pop %v1533
      %v1598 = vtanh.pop %v1534
      %v1599 = vtanh.pop %v1535
      %v1600 = vtanh.pop %v1536
      %v1601 = vtanh.pop %v1537
      %v1602 = vtanh.pop %v1538
      %v1603 = vtanh.pop %v1539
      %v1604 = vtanh.pop %v1540
      %v1605 = vtanh.pop %v1541
      %v1606 = vtanh.pop %v1542
      %v1607 = vtanh.pop %v1543
      %v1608 = vtanh.pop %v1544
      %v1609 = vtanh.pop %v1545
      %v1610 = vtanh.pop %v1546
      %v1611 = vtanh.pop %v1547
      %v1612 = vtanh.pop %v1548
      %v1613 = vtanh.pop %v1549
      %v1614 = vtanh.pop %v1550
      %v1615 = vtanh.pop %v1551
      %v1616 = vtanh.pop %v1552
      %v1617 = vtanh.pop %v1553
      %v1618 = vtanh.pop %v1554
      %v1619 = vtanh.pop %v1555
      %v1620 = vtanh.pop %v1556
      %v1621 = vtanh.pop %v1557
      %v1622 = vtanh.pop %v1558
      %v1623 = vtanh.pop %v1559
      %v1624 = vtanh.pop %v1560
      %v1625 = vtanh.pop %v1561
      %v1626 = vtanh.pop %v1562
      %v1627 = vtanh.pop %v1563
      %v1628 = vtanh.pop %v1564
      %v1629 = vtanh.pop %v1565
      %v1630 = vtanh.pop %v1566
      %v1631 = vtanh.pop %v1567
      %v1632 = vtanh.pop %v1568
      %v1633 = vtanh.pop %v1569
      %v1634 = vtanh.pop %v1570
      %v1635 = vtanh.pop %v1571
      %v1636 = vtanh.pop %v1572
      %v1637 = vtanh.pop %v1573
      %v1638 = vtanh.pop %v1574
      %v1639 = vtanh.pop %v1575
      %v1640 = vtanh.pop %v1576
      %v1641 = vtanh.pop %v1577
      %v1642 = vtanh.pop %v1578
      %v1643 = vtanh.pop %v1579
      %v1644 = vpack.c.bf16 %v1582, %v1580
      %v1645 = vpack.c.bf16 %v1583, %v1581
      %v1646 = vpack.c.bf16 %v1586, %v1584
      %v1647 = vpack.c.bf16 %v1587, %v1585
      %v1648 = vpack.c.bf16 %v1590, %v1588
      %v1649 = vpack.c.bf16 %v1591, %v1589
      %v1650 = vpack.c.bf16 %v1594, %v1592
      %v1651 = vpack.c.bf16 %v1595, %v1593
      %v1652 = vpack.c.bf16 %v1598, %v1596
      %v1653 = vpack.c.bf16 %v1599, %v1597
      %v1654 = vpack.c.bf16 %v1602, %v1600
      %v1655 = vpack.c.bf16 %v1603, %v1601
      %v1656 = vpack.c.bf16 %v1606, %v1604
      %v1657 = vpack.c.bf16 %v1607, %v1605
      %v1658 = vpack.c.bf16 %v1610, %v1608
      %v1659 = vpack.c.bf16 %v1611, %v1609
      %v1660 = vpack.c.bf16 %v1614, %v1612
      %v1661 = vpack.c.bf16 %v1615, %v1613
      %v1662 = vpack.c.bf16 %v1618, %v1616
      %v1663 = vpack.c.bf16 %v1619, %v1617
      %v1664 = vpack.c.bf16 %v1622, %v1620
      %v1665 = vpack.c.bf16 %v1623, %v1621
      %v1666 = vpack.c.bf16 %v1626, %v1624
      %v1667 = vpack.c.bf16 %v1627, %v1625
      %v1668 = vpack.c.bf16 %v1630, %v1628
      %v1669 = vpack.c.bf16 %v1631, %v1629
      %v1670 = vpack.c.bf16 %v1634, %v1632
      %v1671 = vpack.c.bf16 %v1635, %v1633
      %v1672 = vpack.c.bf16 %v1638, %v1636
      %v1673 = vpack.c.bf16 %v1639, %v1637
      %v1674 = vpack.c.bf16 %v1642, %v1640
      %v1675 = vpack.c.bf16 %v1643, %v1641
      %v1676 = vld [vmem:[%s5] sm:$0xf]
      %v1677 = vld [vmem:[%s5 + $0x4] sm:$0xf]
      %v1678 = vld [vmem:[%s5 + $0x8] sm:$0xf]
      %v1679 = vld [vmem:[%s5 + $0xc] sm:$0xf]
      %v1680 = vld [vmem:[%s5 + $0x10] sm:$0xf]
      %v1681 = vld [vmem:[%s5 + $0x14] sm:$0xf]
      %v1682 = vld [vmem:[%s5 + $0x18] sm:$0xf]
      %v1683 = vld [vmem:[%s5 + $0x1c] sm:$0xf]
      %v1684 = vld [vmem:[%s5 + $0x20] sm:$0xf]
      %v1685 = vld [vmem:[%s5 + $0x24] sm:$0xf]
      %v1686 = vld [vmem:[%s5 + $0x28] sm:$0xf]
      %v1687 = vld [vmem:[%s5 + $0x2c] sm:$0xf]
      %v1688 = vld [vmem:[%s5 + $0x30] sm:$0xf]
      %v1689 = vld [vmem:[%s5 + $0x34] sm:$0xf]
      %v1690 = vld [vmem:[%s5 + $0x38] sm:$0xf]
      %v1691 = vld [vmem:[%s5 + $0x3c] sm:$0xf]
      %v1692 = vld [vmem:[%s5 + $0x40] sm:$0xf]
      %v1693 = vld [vmem:[%s5 + $0x44] sm:$0xf]
      %v1694 = vld [vmem:[%s5 + $0x48] sm:$0xf]
      %v1695 = vld [vmem:[%s5 + $0x4c] sm:$0xf]
      %v1696 = vld [vmem:[%s5 + $0x50] sm:$0xf]
      %v1697 = vld [vmem:[%s5 + $0x54] sm:$0xf]
      %v1698 = vld [vmem:[%s5 + $0x58] sm:$0xf]
      %v1699 = vld [vmem:[%s5 + $0x5c] sm:$0xf]
      %v1700 = vld [vmem:[%s5 + $0x60] sm:$0xf]
      %v1701 = vld [vmem:[%s5 + $0x64] sm:$0xf]
      %v1702 = vld [vmem:[%s5 + $0x68] sm:$0xf]
      %v1703 = vld [vmem:[%s5 + $0x6c] sm:$0xf]
      %v1704 = vld [vmem:[%s5 + $0x70] sm:$0xf]
      %v1705 = vld [vmem:[%s5 + $0x74] sm:$0xf]
      %v1706 = vld [vmem:[%s5 + $0x78] sm:$0xf]
      %v1707 = vld [vmem:[%s5 + $0x7c] sm:$0xf]
      %v1708 = vld [vmem:[%s6] sm:$0x1]
      %v1710 = vlaneseq
      %v1711 = vshrl.u32 %v1710, 7
      %v1712 = vsub.s32 0, %v1711
      %v1713 = vrot.slane %v1708, %v1712
      %v1747 = vunpack.c.l.b16 %v1676
      %v1748 = vunpack.c.l.b16 %v1677
      %v1749 = vunpack.c.l.b16 %v1678
      %v1750 = vunpack.c.l.b16 %v1679
      %v1751 = vunpack.c.l.b16 %v1680
      %v1752 = vunpack.c.l.b16 %v1681
      %v1753 = vunpack.c.l.b16 %v1682
      %v1754 = vunpack.c.l.b16 %v1683
      %v1755 = vunpack.c.l.b16 %v1684
      %v1756 = vunpack.c.l.b16 %v1685
      %v1757 = vunpack.c.l.b16 %v1686
      %v1758 = vunpack.c.l.b16 %v1687
      %v1759 = vunpack.c.l.b16 %v1688
      %v1760 = vunpack.c.l.b16 %v1689
      %v1761 = vunpack.c.l.b16 %v1690
      %v1762 = vunpack.c.l.b16 %v1691
      %v1763 = vunpack.c.l.b16 %v1692
      %v1764 = vunpack.c.l.b16 %v1693
      %v1765 = vunpack.c.l.b16 %v1694
      %v1766 = vunpack.c.l.b16 %v1695
      %v1767 = vunpack.c.l.b16 %v1696
      %v1768 = vunpack.c.l.b16 %v1697
      %v1769 = vunpack.c.l.b16 %v1698
      %v1770 = vunpack.c.l.b16 %v1699
      %v1771 = vunpack.c.l.b16 %v1700
      %v1772 = vunpack.c.l.b16 %v1701
      %v1773 = vunpack.c.l.b16 %v1702
      %v1774 = vunpack.c.l.b16 %v1703
      %v1775 = vunpack.c.l.b16 %v1704
      %v1776 = vunpack.c.l.b16 %v1705
      %v1777 = vunpack.c.l.b16 %v1706
      %v1778 = vunpack.c.l.b16 %v1707
      %v1779 = vpack.c.b16 %v1748, %v1747
      %v1780 = vpack.c.b16 %v1750, %v1749
      %v1781 = vpack.c.b16 %v1752, %v1751
      %v1782 = vpack.c.b16 %v1754, %v1753
      %v1783 = vpack.c.b16 %v1756, %v1755
      %v1784 = vpack.c.b16 %v1758, %v1757
      %v1785 = vpack.c.b16 %v1760, %v1759
      %v1786 = vpack.c.b16 %v1762, %v1761
      %v1787 = vpack.c.b16 %v1764, %v1763
      %v1788 = vpack.c.b16 %v1766, %v1765
      %v1789 = vpack.c.b16 %v1768, %v1767
      %v1790 = vpack.c.b16 %v1770, %v1769
      %v1791 = vpack.c.b16 %v1772, %v1771
      %v1792 = vpack.c.b16 %v1774, %v1773
      %v1793 = vpack.c.b16 %v1776, %v1775
      %v1794 = vpack.c.b16 %v1778, %v1777
      %1811 = vmatprep.subr.bf16.mxu0 0
      %1812 = vmatpush1.bf16.msra.mxu0 %v1779
      %1813 = vmatprep.subr.bf16.mxu0 0
      %1814 = vmatpush1.bf16.msra.mxu0 %v1780
      %1815 = vmatprep.subr.bf16.mxu0 0
      %1816 = vmatpush1.bf16.msra.mxu0 %v1781
      %1817 = vmatprep.subr.bf16.mxu0 0
      %1818 = vmatpush1.bf16.msra.mxu0 %v1782
      %1819 = vmatprep.subr.bf16.mxu0 0
      %1820 = vmatpush1.bf16.msra.mxu0 %v1783
      %1821 = vmatprep.subr.bf16.mxu0 0
      %1822 = vmatpush1.bf16.msra.mxu0 %v1784
      %1823 = vmatprep.subr.bf16.mxu0 0
      %1824 = vmatpush1.bf16.msra.mxu0 %v1785
      %1825 = vmatprep.subr.bf16.mxu0 0
      %1826 = vmatpush1.bf16.msra.mxu0 %v1786
      %1827 = vmatprep.subr.bf16.mxu0 0
      %1828 = vmatpush1.bf16.msra.mxu0 %v1787
      %1829 = vmatprep.subr.bf16.mxu0 0
      %1830 = vmatpush1.bf16.msra.mxu0 %v1788
      %1831 = vmatprep.subr.bf16.mxu0 0
      %1832 = vmatpush1.bf16.msra.mxu0 %v1789
      %1833 = vmatprep.subr.bf16.mxu0 0
      %1834 = vmatpush1.bf16.msra.mxu0 %v1790
      %1835 = vmatprep.subr.bf16.mxu0 0
      %1836 = vmatpush1.bf16.msra.mxu0 %v1791
      %1837 = vmatprep.subr.bf16.mxu0 0
      %1838 = vmatpush1.bf16.msra.mxu0 %v1792
      %1839 = vmatprep.subr.bf16.mxu0 0
      %1840 = vmatpush1.bf16.msra.mxu0 %v1793
      %1841 = vmatprep.subr.bf16.mxu0 0
      %1842 = vmatpush1.bf16.msra.mxu0 %v1794
      %1843 = vmatprep.mubr.bf16.mxu0 %v1645
      %1844 = vmatmul.mubr.bf16.gmra.mrb[0].mxu0 %v1644
      %v1845 = vpop.f32.mrb[0].mxu0
      %v1846 = vadd.f32 %v1713, %v1845
      %v1847 = vpop.f32.mrb[0].mxu0
      %v1848 = vpop.f32.mrb[0].mxu0
      %v1849 = vadd.f32 %v1713, %v1848
      %v1850 = vpop.f32.mrb[0].mxu0
      %1851 = vmatprep.mubr.bf16.mxu0 %v1647
      %1852 = vmatmul.mubr.bf16.gmra.mrb[0].mxu0 %v1646
      %v1853 = vpop.f32.mrb[0].mxu0
      %v1854 = vadd.f32 %v1713, %v1853
      %v1855 = vpop.f32.mrb[0].mxu0
      %v1856 = vpop.f32.mrb[0].mxu0
      %v1857 = vadd.f32 %v1713, %v1856
      %v1858 = vpop.f32.mrb[0].mxu0
      %1859 = vmatprep.mubr.bf16.mxu0 %v1649
      %1860 = vmatmul.mubr.bf16.gmra.mrb[0].mxu0 %v1648
      %v1861 = vpop.f32.mrb[0].mxu0
      %v1862 = vadd.f32 %v1713, %v1861
      %v1863 = vpop.f32.mrb[0].mxu0
      %v1864 = vpop.f32.mrb[0].mxu0
      %v1865 = vadd.f32 %v1713, %v1864
      %v1866 = vpop.f32.mrb[0].mxu0
      %1867 = vmatprep.mubr.bf16.mxu0 %v1651
      %1868 = vmatmul.mubr.bf16.gmra.mrb[0].mxu0 %v1650
      %v1869 = vpop.f32.mrb[0].mxu0
      %v1870 = vadd.f32 %v1713, %v1869
      %v1871 = vpop.f32.mrb[0].mxu0
      %v1872 = vpop.f32.mrb[0].mxu0
      %v1873 = vadd.f32 %v1713, %v1872
      %v1874 = vpop.f32.mrb[0].mxu0
      %1875 = vmatprep.mubr.bf16.mxu0 %v1653
      %1876 = vmatmul.mubr.bf16.gmra.mrb[0].mxu0 %v1652
      %v1877 = vpop.f32.mrb[0].mxu0
      %v1878 = vadd.f32 %v1713, %v1877
      %v1879 = vpop.f32.mrb[0].mxu0
      %v1880 = vpop.f32.mrb[0].mxu0
      %v1881 = vadd.f32 %v1713, %v1880
      %v1882 = vpop.f32.mrb[0].mxu0
      %1883 = vmatprep.mubr.bf16.mxu0 %v1655
      %1884 = vmatmul.mubr.bf16.gmra.mrb[0].mxu0 %v1654
      %v1885 = vpop.f32.mrb[0].mxu0
      %v1886 = vadd.f32 %v1713, %v1885
      %v1887 = vpop.f32.mrb[0].mxu0
      %v1888 = vpop.f32.mrb[0].mxu0
      %v1889 = vadd.f32 %v1713, %v1888
      %v1890 = vpop.f32.mrb[0].mxu0
      %1891 = vmatprep.mubr.bf16.mxu0 %v1657
      %1892 = vmatmul.mubr.bf16.gmra.mrb[0].mxu0 %v1656
      %v1893 = vpop.f32.mrb[0].mxu0
      %v1894 = vadd.f32 %v1713, %v1893
      %v1895 = vpop.f32.mrb[0].mxu0
      %v1896 = vpop.f32.mrb[0].mxu0
      %v1897 = vadd.f32 %v1713, %v1896
      %v1898 = vpop.f32.mrb[0].mxu0
      %1899 = vmatprep.mubr.bf16.mxu0 %v1659
      %1900 = vmatmul.mubr.bf16.gmra.mrb[0].mxu0 %v1658
      %v1901 = vpop.f32.mrb[0].mxu0
      %v1902 = vadd.f32 %v1713, %v1901
      %v1903 = vpop.f32.mrb[0].mxu0
      %v1904 = vpop.f32.mrb[0].mxu0
      %v1905 = vadd.f32 %v1713, %v1904
      %v1906 = vpop.f32.mrb[0].mxu0
      %1907 = vmatprep.mubr.bf16.mxu0 %v1661
      %1908 = vmatmul.mubr.bf16.gmra.mrb[0].mxu0 %v1660
      %v1909 = vpop.f32.mrb[0].mxu0
      %v1910 = vadd.f32 %v1713, %v1909
      %v1911 = vpop.f32.mrb[0].mxu0
      %v1912 = vpop.f32.mrb[0].mxu0
      %v1913 = vadd.f32 %v1713, %v1912
      %v1914 = vpop.f32.mrb[0].mxu0
      %1915 = vmatprep.mubr.bf16.mxu0 %v1663
      %1916 = vmatmul.mubr.bf16.gmra.mrb[0].mxu0 %v1662
      %v1917 = vpop.f32.mrb[0].mxu0
      %v1918 = vadd.f32 %v1713, %v1917
      %v1919 = vpop.f32.mrb[0].mxu0
      %v1920 = vpop.f32.mrb[0].mxu0
      %v1921 = vadd.f32 %v1713, %v1920
      %v1922 = vpop.f32.mrb[0].mxu0
      %1923 = vmatprep.mubr.bf16.mxu0 %v1665
      %1924 = vmatmul.mubr.bf16.gmra.mrb[0].mxu0 %v1664
      %v1925 = vpop.f32.mrb[0].mxu0
      %v1926 = vadd.f32 %v1713, %v1925
      %v1927 = vpop.f32.mrb[0].mxu0
      %v1928 = vpop.f32.mrb[0].mxu0
      %v1929 = vadd.f32 %v1713, %v1928
      %v1930 = vpop.f32.mrb[0].mxu0
      %1931 = vmatprep.mubr.bf16.mxu0 %v1667
      %1932 = vmatmul.mubr.bf16.gmra.mrb[0].mxu0 %v1666
      %v1933 = vpop.f32.mrb[0].mxu0
      %v1934 = vadd.f32 %v1713, %v1933
      %v1935 = vpop.f32.mrb[0].mxu0
      %v1936 = vpop.f32.mrb[0].mxu0
      %v1937 = vadd.f32 %v1713, %v1936
      %v1938 = vpop.f32.mrb[0].mxu0
      %1939 = vmatprep.mubr.bf16.mxu0 %v1669
      %1940 = vmatmul.mubr.bf16.gmra.mrb[0].mxu0 %v1668
      %v1941 = vpop.f32.mrb[0].mxu0
      %v1942 = vadd.f32 %v1713, %v1941
      %v1943 = vpop.f32.mrb[0].mxu0
      %v1944 = vpop.f32.mrb[0].mxu0
      %v1945 = vadd.f32 %v1713, %v1944
      %v1946 = vpop.f32.mrb[0].mxu0
      %1947 = vmatprep.mubr.bf16.mxu0 %v1671
      %1948 = vmatmul.mubr.bf16.gmra.mrb[0].mxu0 %v1670
      %v1949 = vpop.f32.mrb[0].mxu0
      %v1950 = vadd.f32 %v1713, %v1949
      %v1951 = vpop.f32.mrb[0].mxu0
      %v1952 = vpop.f32.mrb[0].mxu0
      %v1953 = vadd.f32 %v1713, %v1952
      %v1954 = vpop.f32.mrb[0].mxu0
      %1955 = vmatprep.mubr.bf16.mxu0 %v1673
      %1956 = vmatmul.mubr.bf16.gmra.mrb[0].mxu0 %v1672
      %v1957 = vpop.f32.mrb[0].mxu0
      %v1958 = vadd.f32 %v1713, %v1957
      %v1959 = vpop.f32.mrb[0].mxu0
      %v1960 = vpop.f32.mrb[0].mxu0
      %v1961 = vadd.f32 %v1713, %v1960
      %v1962 = vpop.f32.mrb[0].mxu0
      %1963 = vmatprep.mubr.bf16.mxu0 %v1675
      %1964 = vmatmul.mubr.bf16.gmra.mrb[0].mxu0 %v1674
      %v1965 = vpop.f32.mrb[0].mxu0
      %v1966 = vadd.f32 %v1713, %v1965
      %v1967 = vpop.f32.mrb[0].mxu0
      %v1968 = vpop.f32.mrb[0].mxu0
      %v1969 = vadd.f32 %v1713, %v1968
      %v1970 = vpop.f32.mrb[0].mxu0
      %1971 = vdwg.mxu0
      %v1972 = vtanh.pop %v1846
      %v1973 = vtanh.pop %v1849
      %v1974 = vtanh.pop %v1854
      %v1975 = vtanh.pop %v1857
      %v1976 = vtanh.pop %v1862
      %v1977 = vtanh.pop %v1865
      %v1978 = vtanh.pop %v1870
      %v1979 = vtanh.pop %v1873
      %v1980 = vtanh.pop %v1878
      %v1981 = vtanh.pop %v1881
      %v1982 = vtanh.pop %v1886
      %v1983 = vtanh.pop %v1889
      %v1984 = vtanh.pop %v1894
      %v1985 = vtanh.pop %v1897
      %v1986 = vtanh.pop %v1902
      %v1987 = vtanh.pop %v1905
      %v1988 = vtanh.pop %v1910
      %v1989 = vtanh.pop %v1913
      %v1990 = vtanh.pop %v1918
      %v1991 = vtanh.pop %v1921
      %v1992 = vtanh.pop %v1926
      %v1993 = vtanh.pop %v1929
      %v1994 = vtanh.pop %v1934
      %v1995 = vtanh.pop %v1937
      %v1996 = vtanh.pop %v1942
      %v1997 = vtanh.pop %v1945
      %v1998 = vtanh.pop %v1950
      %v1999 = vtanh.pop %v1953
      %v2000 = vtanh.pop %v1958
      %v2001 = vtanh.pop %v1961
      %v2002 = vtanh.pop %v1966
      %v2003 = vtanh.pop %v1969
      %v2004 = vpack.c.bf16 %v1973, %v1972
      %v2005 = vpack.c.bf16 %v1975, %v1974
      %v2006 = vpack.c.bf16 %v1977, %v1976
      %v2007 = vpack.c.bf16 %v1979, %v1978
      %v2008 = vpack.c.bf16 %v1981, %v1980
      %v2009 = vpack.c.bf16 %v1983, %v1982
      %v2010 = vpack.c.bf16 %v1985, %v1984
      %v2011 = vpack.c.bf16 %v1987, %v1986
      %v2012 = vpack.c.bf16 %v1989, %v1988
      %v2013 = vpack.c.bf16 %v1991, %v1990
      %v2014 = vpack.c.bf16 %v1993, %v1992
      %v2015 = vpack.c.bf16 %v1995, %v1994
      %v2016 = vpack.c.bf16 %v1997, %v1996
      %v2017 = vpack.c.bf16 %v1999, %v1998
      %v2018 = vpack.c.bf16 %v2001, %v2000
      %v2019 = vpack.c.bf16 %v2003, %v2002
      %v2020 = vld [vmem:[%s7] sm:$0xf]
      %v2021 = vld [vmem:[%s7 + $0x4] sm:$0xf]
      %v2022 = vld [vmem:[%s7 + $0x8] sm:$0xf]
      %v2023 = vld [vmem:[%s7 + $0xc] sm:$0xf]
      %v2024 = vld [vmem:[%s7 + $0x10] sm:$0xf]
      %v2025 = vld [vmem:[%s7 + $0x14] sm:$0xf]
      %v2026 = vld [vmem:[%s7 + $0x18] sm:$0xf]
      %v2027 = vld [vmem:[%s7 + $0x1c] sm:$0xf]
      %v2028 = vld [vmem:[%s7 + $0x20] sm:$0xf]
      %v2029 = vld [vmem:[%s7 + $0x24] sm:$0xf]
      %v2030 = vld [vmem:[%s7 + $0x28] sm:$0xf]
      %v2031 = vld [vmem:[%s7 + $0x2c] sm:$0xf]
      %v2032 = vld [vmem:[%s7 + $0x30] sm:$0xf]
      %v2033 = vld [vmem:[%s7 + $0x34] sm:$0xf]
      %v2034 = vld [vmem:[%s7 + $0x38] sm:$0xf]
      %v2035 = vld [vmem:[%s7 + $0x3c] sm:$0xf]
      %v2036 = vld [vmem:[%s8] sm:$0x1]
      %v2038 = vlaneseq
      %v2039 = vshrl.u32 %v2038, 7
      %v2040 = vsub.s32 0, %v2039
      %v2041 = vrot.slane %v2036, %v2040
      %v2059 = vunpack.c.l.b16 %v2020
      %v2060 = vunpack.c.l.b16 %v2021
      %v2061 = vunpack.c.l.b16 %v2022
      %v2062 = vunpack.c.l.b16 %v2023
      %v2063 = vunpack.c.l.b16 %v2024
      %v2064 = vunpack.c.l.b16 %v2025
      %v2065 = vunpack.c.l.b16 %v2026
      %v2066 = vunpack.c.l.b16 %v2027
      %v2067 = vunpack.c.l.b16 %v2028
      %v2068 = vunpack.c.l.b16 %v2029
      %v2069 = vunpack.c.l.b16 %v2030
      %v2070 = vunpack.c.l.b16 %v2031
      %v2071 = vunpack.c.l.b16 %v2032
      %v2072 = vunpack.c.l.b16 %v2033
      %v2073 = vunpack.c.l.b16 %v2034
      %v2074 = vunpack.c.l.b16 %v2035
      %v2075 = vpack.c.b16 %v2060, %v2059
      %v2076 = vpack.c.b16 %v2062, %v2061
      %v2077 = vpack.c.b16 %v2064, %v2063
      %v2078 = vpack.c.b16 %v2066, %v2065
      %v2079 = vpack.c.b16 %v2068, %v2067
      %v2080 = vpack.c.b16 %v2070, %v2069
      %v2081 = vpack.c.b16 %v2072, %v2071
      %v2082 = vpack.c.b16 %v2074, %v2073
      %2091 = vmatprep.subr.bf16.mxu0 0
      %2092 = vmatpush1.bf16.msra.mxu0 %v2075
      %2093 = vmatprep.subr.bf16.mxu0 0
      %2094 = vmatpush1.bf16.msra.mxu0 %v2076
      %2095 = vmatprep.subr.bf16.mxu0 0
      %2096 = vmatpush1.bf16.msra.mxu0 %v2077
      %2097 = vmatprep.subr.bf16.mxu0 0
      %2098 = vmatpush1.bf16.msra.mxu0 %v2078
      %2099 = vmatprep.subr.bf16.mxu0 0
      %2100 = vmatpush1.bf16.msra.mxu0 %v2079
      %2101 = vmatprep.subr.bf16.mxu0 0
      %2102 = vmatpush1.bf16.msra.mxu0 %v2080
      %2103 = vmatprep.subr.bf16.mxu0 0
      %2104 = vmatpush1.bf16.msra.mxu0 %v2081
      %2105 = vmatprep.subr.bf16.mxu0 0
      %2106 = vmatpush1.bf16.msra.mxu0 %v2082
      %2107 = vmatprep.subr.bf16.mxu0 0
      %2108 = vmatpush1.bf16.msra.mxu0 0
      %2109 = vmatprep.subr.bf16.mxu0 0
      %2110 = vmatpush1.bf16.msra.mxu0 0
      %2111 = vmatprep.subr.bf16.mxu0 0
      %2112 = vmatpush1.bf16.msra.mxu0 0
      %2113 = vmatprep.subr.bf16.mxu0 0
      %2114 = vmatpush1.bf16.msra.mxu0 0
      %2115 = vmatprep.subr.bf16.mxu0 0
      %2116 = vmatpush1.bf16.msra.mxu0 0
      %2117 = vmatprep.subr.bf16.mxu0 0
      %2118 = vmatpush1.bf16.msra.mxu0 0
      %2119 = vmatprep.subr.bf16.mxu0 0
      %2120 = vmatpush1.bf16.msra.mxu0 0
      %2121 = vmatprep.subr.bf16.mxu0 0
      %2122 = vmatpush1.bf16.msra.mxu0 0
      %2123 = vmatprep.mubr.bf16.mxu0 0
      %2124 = vmatmul.mubr.bf16.gmra.mrb[0].mxu0 %v2004
      %v2125 = vpop.f32.mrb[0].mxu0
      %v2126 = vadd.f32 %v2041, %v2125
      %v2127 = vpop.f32.mrb[0].mxu0
      %v2128 = vpop.f32.mrb[0].mxu0
      %v2129 = vadd.f32 %v2041, %v2128
      %v2130 = vpop.f32.mrb[0].mxu0
      %2131 = vmatprep.mubr.bf16.mxu0 0
      %2132 = vmatmul.mubr.bf16.gmra.mrb[0].mxu0 %v2005
      %v2133 = vpop.f32.mrb[0].mxu0
      %v2134 = vadd.f32 %v2041, %v2133
      %v2135 = vpop.f32.mrb[0].mxu0
      %v2136 = vpop.f32.mrb[0].mxu0
      %v2137 = vadd.f32 %v2041, %v2136
      %v2138 = vpop.f32.mrb[0].mxu0
      %2139 = vmatprep.mubr.bf16.mxu0 0
      %2140 = vmatmul.mubr.bf16.gmra.mrb[0].mxu0 %v2006
      %v2141 = vpop.f32.mrb[0].mxu0
      %v2142 = vadd.f32 %v2041, %v2141
      %v2143 = vpop.f32.mrb[0].mxu0
      %v2144 = vpop.f32.mrb[0].mxu0
      %v2145 = vadd.f32 %v2041, %v2144
      %v2146 = vpop.f32.mrb[0].mxu0
      %2147 = vmatprep.mubr.bf16.mxu0 0
      %2148 = vmatmul.mubr.bf16.gmra.mrb[0].mxu0 %v2007
      %v2149 = vpop.f32.mrb[0].mxu0
      %v2150 = vadd.f32 %v2041, %v2149
      %v2151 = vpop.f32.mrb[0].mxu0
      %v2152 = vpop.f32.mrb[0].mxu0
      %v2153 = vadd.f32 %v2041, %v2152
      %v2154 = vpop.f32.mrb[0].mxu0
      %2155 = vmatprep.mubr.bf16.mxu0 0
      %2156 = vmatmul.mubr.bf16.gmra.mrb[0].mxu0 %v2008
      %v2157 = vpop.f32.mrb[0].mxu0
      %v2158 = vadd.f32 %v2041, %v2157
      %v2159 = vpop.f32.mrb[0].mxu0
      %v2160 = vpop.f32.mrb[0].mxu0
      %v2161 = vadd.f32 %v2041, %v2160
      %v2162 = vpop.f32.mrb[0].mxu0
      %2163 = vmatprep.mubr.bf16.mxu0 0
      %2164 = vmatmul.mubr.bf16.gmra.mrb[0].mxu0 %v2009
      %v2165 = vpop.f32.mrb[0].mxu0
      %v2166 = vadd.f32 %v2041, %v2165
      %v2167 = vpop.f32.mrb[0].mxu0
      %v2168 = vpop.f32.mrb[0].mxu0
      %v2169 = vadd.f32 %v2041, %v2168
      %v2170 = vpop.f32.mrb[0].mxu0
      %2171 = vmatprep.mubr.bf16.mxu0 0
      %2172 = vmatmul.mubr.bf16.gmra.mrb[0].mxu0 %v2010
      %v2173 = vpop.f32.mrb[0].mxu0
      %v2174 = vadd.f32 %v2041, %v2173
      %v2175 = vpop.f32.mrb[0].mxu0
      %v2176 = vpop.f32.mrb[0].mxu0
      %v2177 = vadd.f32 %v2041, %v2176
      %v2178 = vpop.f32.mrb[0].mxu0
      %2179 = vmatprep.mubr.bf16.mxu0 0
      %2180 = vmatmul.mubr.bf16.gmra.mrb[0].mxu0 %v2011
      %v2181 = vpop.f32.mrb[0].mxu0
      %v2182 = vadd.f32 %v2041, %v2181
      %v2183 = vpop.f32.mrb[0].mxu0
      %v2184 = vpop.f32.mrb[0].mxu0
      %v2185 = vadd.f32 %v2041, %v2184
      %v2186 = vpop.f32.mrb[0].mxu0
      %2187 = vmatprep.mubr.bf16.mxu0 0
      %2188 = vmatmul.mubr.bf16.gmra.mrb[0].mxu0 %v2012
      %v2189 = vpop.f32.mrb[0].mxu0
      %v2190 = vadd.f32 %v2041, %v2189
      %v2191 = vpop.f32.mrb[0].mxu0
      %v2192 = vpop.f32.mrb[0].mxu0
      %v2193 = vadd.f32 %v2041, %v2192
      %v2194 = vpop.f32.mrb[0].mxu0
      %2195 = vmatprep.mubr.bf16.mxu0 0
      %2196 = vmatmul.mubr.bf16.gmra.mrb[0].mxu0 %v2013
      %v2197 = vpop.f32.mrb[0].mxu0
      %v2198 = vadd.f32 %v2041, %v2197
      %v2199 = vpop.f32.mrb[0].mxu0
      %v2200 = vpop.f32.mrb[0].mxu0
      %v2201 = vadd.f32 %v2041, %v2200
      %v2202 = vpop.f32.mrb[0].mxu0
      %2203 = vmatprep.mubr.bf16.mxu0 0
      %2204 = vmatmul.mubr.bf16.gmra.mrb[0].mxu0 %v2014
      %v2205 = vpop.f32.mrb[0].mxu0
      %v2206 = vadd.f32 %v2041, %v2205
      %v2207 = vpop.f32.mrb[0].mxu0
      %v2208 = vpop.f32.mrb[0].mxu0
      %v2209 = vadd.f32 %v2041, %v2208
      %v2210 = vpop.f32.mrb[0].mxu0
      %2211 = vmatprep.mubr.bf16.mxu0 0
      %2212 = vmatmul.mubr.bf16.gmra.mrb[0].mxu0 %v2015
      %v2213 = vpop.f32.mrb[0].mxu0
      %v2214 = vadd.f32 %v2041, %v2213
      %v2215 = vpop.f32.mrb[0].mxu0
      %v2216 = vpop.f32.mrb[0].mxu0
      %v2217 = vadd.f32 %v2041, %v2216
      %v2218 = vpop.f32.mrb[0].mxu0
      %2219 = vmatprep.mubr.bf16.mxu0 0
      %2220 = vmatmul.mubr.bf16.gmra.mrb[0].mxu0 %v2016
      %v2221 = vpop.f32.mrb[0].mxu0
      %v2222 = vadd.f32 %v2041, %v2221
      %v2223 = vpop.f32.mrb[0].mxu0
      %v2224 = vpop.f32.mrb[0].mxu0
      %v2225 = vadd.f32 %v2041, %v2224
      %v2226 = vpop.f32.mrb[0].mxu0
      %2227 = vmatprep.mubr.bf16.mxu0 0
      %2228 = vmatmul.mubr.bf16.gmra.mrb[0].mxu0 %v2017
      %v2229 = vpop.f32.mrb[0].mxu0
      %v2230 = vadd.f32 %v2041, %v2229
      %v2231 = vpop.f32.mrb[0].mxu0
      %v2232 = vpop.f32.mrb[0].mxu0
      %v2233 = vadd.f32 %v2041, %v2232
      %v2234 = vpop.f32.mrb[0].mxu0
      %2235 = vmatprep.mubr.bf16.mxu0 0
      %2236 = vmatmul.mubr.bf16.gmra.mrb[0].mxu0 %v2018
      %v2237 = vpop.f32.mrb[0].mxu0
      %v2238 = vadd.f32 %v2041, %v2237
      %v2239 = vpop.f32.mrb[0].mxu0
      %v2240 = vpop.f32.mrb[0].mxu0
      %v2241 = vadd.f32 %v2041, %v2240
      %v2242 = vpop.f32.mrb[0].mxu0
      %2243 = vmatprep.mubr.bf16.mxu0 0
      %2244 = vmatmul.mubr.bf16.gmra.mrb[0].mxu0 %v2019
      %v2245 = vpop.f32.mrb[0].mxu0
      %v2246 = vadd.f32 %v2041, %v2245
      %v2247 = vpop.f32.mrb[0].mxu0
      %v2248 = vpop.f32.mrb[0].mxu0
      %v2249 = vadd.f32 %v2041, %v2248
      %v2250 = vpop.f32.mrb[0].mxu0
      %2251 = vdwg.mxu0
      %v2252 = vtanh.pop %v2126
      %v2253 = vtanh.pop %v2129
      %v2254 = vtanh.pop %v2134
      %v2255 = vtanh.pop %v2137
      %v2256 = vtanh.pop %v2142
      %v2257 = vtanh.pop %v2145
      %v2258 = vtanh.pop %v2150
      %v2259 = vtanh.pop %v2153
      %v2260 = vtanh.pop %v2158
      %v2261 = vtanh.pop %v2161
      %v2262 = vtanh.pop %v2166
      %v2263 = vtanh.pop %v2169
      %v2264 = vtanh.pop %v2174
      %v2265 = vtanh.pop %v2177
      %v2266 = vtanh.pop %v2182
      %v2267 = vtanh.pop %v2185
      %v2268 = vtanh.pop %v2190
      %v2269 = vtanh.pop %v2193
      %v2270 = vtanh.pop %v2198
      %v2271 = vtanh.pop %v2201
      %v2272 = vtanh.pop %v2206
      %v2273 = vtanh.pop %v2209
      %v2274 = vtanh.pop %v2214
      %v2275 = vtanh.pop %v2217
      %v2276 = vtanh.pop %v2222
      %v2277 = vtanh.pop %v2225
      %v2278 = vtanh.pop %v2230
      %v2279 = vtanh.pop %v2233
      %v2280 = vtanh.pop %v2238
      %v2281 = vtanh.pop %v2241
      %v2282 = vtanh.pop %v2246
      %v2283 = vtanh.pop %v2249
      %v2284 = vpack.c.bf16 %v2253, %v2252
      %v2285 = vpack.c.bf16 %v2255, %v2254
      %v2286 = vpack.c.bf16 %v2257, %v2256
      %v2287 = vpack.c.bf16 %v2259, %v2258
      %v2288 = vpack.c.bf16 %v2261, %v2260
      %v2289 = vpack.c.bf16 %v2263, %v2262
      %v2290 = vpack.c.bf16 %v2265, %v2264
      %v2291 = vpack.c.bf16 %v2267, %v2266
      %v2292 = vpack.c.bf16 %v2269, %v2268
      %v2293 = vpack.c.bf16 %v2271, %v2270
      %v2294 = vpack.c.bf16 %v2273, %v2272
      %v2295 = vpack.c.bf16 %v2275, %v2274
      %v2296 = vpack.c.bf16 %v2277, %v2276
      %v2297 = vpack.c.bf16 %v2279, %v2278
      %v2298 = vpack.c.bf16 %v2281, %v2280
      %v2299 = vpack.c.bf16 %v2283, %v2282
      %v2300 = vld [vmem:[%s9] sm:$0xf]
      %v2301 = vld [vmem:[%s9 + $0x4] sm:$0xf]
      %v2302 = vld [vmem:[%s9 + $0x8] sm:$0xf]
      %v2303 = vld [vmem:[%s9 + $0xc] sm:$0xf]
      %v2304 = vld [vmem:[%s9 + $0x10] sm:$0xf]
      %v2305 = vld [vmem:[%s9 + $0x14] sm:$0xf]
      %v2306 = vld [vmem:[%s9 + $0x18] sm:$0xf]
      %v2307 = vld [vmem:[%s9 + $0x1c] sm:$0xf]
      %v2308 = vld [vmem:[%s10] sm:$0x1]
      %v2310 = vlaneseq
      %v2311 = vshrl.u32 %v2310, 7
      %v2312 = vsub.s32 0, %v2311
      %v2313 = vrot.slane %v2308, %v2312
      %v2323 = vunpack.c.l.b16 %v2300
      %v2324 = vunpack.c.l.b16 %v2301
      %v2325 = vunpack.c.l.b16 %v2302
      %v2326 = vunpack.c.l.b16 %v2303
      %v2327 = vunpack.c.l.b16 %v2304
      %v2328 = vunpack.c.l.b16 %v2305
      %v2329 = vunpack.c.l.b16 %v2306
      %v2330 = vunpack.c.l.b16 %v2307
      %v2331 = vpack.c.b16 %v2324, %v2323
      %v2332 = vpack.c.b16 %v2326, %v2325
      %v2333 = vpack.c.b16 %v2328, %v2327
      %v2334 = vpack.c.b16 %v2330, %v2329
      %vm2339 = vcmask 523264
      %v2341 = vsel %vm2339, %v2284, 0
      %v2344 = vsel %vm2339, %v2285, 0
      %v2347 = vsel %vm2339, %v2286, 0
      %v2350 = vsel %vm2339, %v2287, 0
      %v2353 = vsel %vm2339, %v2288, 0
      %v2356 = vsel %vm2339, %v2289, 0
      %v2359 = vsel %vm2339, %v2290, 0
      %v2362 = vsel %vm2339, %v2291, 0
      %v2365 = vsel %vm2339, %v2292, 0
      %v2368 = vsel %vm2339, %v2293, 0
      %v2371 = vsel %vm2339, %v2294, 0
      %v2374 = vsel %vm2339, %v2295, 0
      %v2377 = vsel %vm2339, %v2296, 0
      %v2380 = vsel %vm2339, %v2297, 0
      %v2383 = vsel %vm2339, %v2298, 0
      %v2386 = vsel %vm2339, %v2299, 0
      %2388 = vmatprep.subr.bf16.mxu0 0
      %2389 = vmatpush1.bf16.msra.mxu0 %v2331
      %2390 = vmatprep.subr.bf16.mxu0 0
      %2391 = vmatpush1.bf16.msra.mxu0 %v2332
      %2392 = vmatprep.subr.bf16.mxu0 0
      %2393 = vmatpush1.bf16.msra.mxu0 %v2333
      %2394 = vmatprep.subr.bf16.mxu0 0
      %2395 = vmatpush1.bf16.msra.mxu0 %v2334
      %2396 = vmatprep.subr.bf16.mxu0 0
      %2397 = vmatpush1.bf16.msra.mxu0 0
      %2398 = vmatprep.subr.bf16.mxu0 0
      %2399 = vmatpush1.bf16.msra.mxu0 0
      %2400 = vmatprep.subr.bf16.mxu0 0
      %2401 = vmatpush1.bf16.msra.mxu0 0
      %2402 = vmatprep.subr.bf16.mxu0 0
      %2403 = vmatpush1.bf16.msra.mxu0 0
      %2404 = vmatprep.subr.bf16.mxu0 0
      %2405 = vmatpush1.bf16.msra.mxu0 0
      %2406 = vmatprep.subr.bf16.mxu0 0
      %2407 = vmatpush1.bf16.msra.mxu0 0
      %2408 = vmatprep.subr.bf16.mxu0 0
      %2409 = vmatpush1.bf16.msra.mxu0 0
      %2410 = vmatprep.subr.bf16.mxu0 0
      %2411 = vmatpush1.bf16.msra.mxu0 0
      %2412 = vmatprep.subr.bf16.mxu0 0
      %2413 = vmatpush1.bf16.msra.mxu0 0
      %2414 = vmatprep.subr.bf16.mxu0 0
      %2415 = vmatpush1.bf16.msra.mxu0 0
      %2416 = vmatprep.subr.bf16.mxu0 0
      %2417 = vmatpush1.bf16.msra.mxu0 0
      %2418 = vmatprep.subr.bf16.mxu0 0
      %2419 = vmatpush1.bf16.msra.mxu0 0
      %2420 = vmatprep.mubr.bf16.mxu0 0
      %2421 = vmatmul.mubr.bf16.gmra.mrb[0].mxu0 %v2341
      %v2422 = vpop.f32.mrb[0].mxu0
      %v2423 = vadd.f32 %v2313, %v2422
      %v2424 = vpop.f32.mrb[0].mxu0
      %v2425 = vpop.f32.mrb[0].mxu0
      %v2426 = vadd.f32 %v2313, %v2425
      %v2427 = vpop.f32.mrb[0].mxu0
      %2428 = vmatprep.mubr.bf16.mxu0 0
      %2429 = vmatmul.mubr.bf16.gmra.mrb[0].mxu0 %v2344
      %v2430 = vpop.f32.mrb[0].mxu0
      %v2431 = vadd.f32 %v2313, %v2430
      %v2432 = vpop.f32.mrb[0].mxu0
      %v2433 = vpop.f32.mrb[0].mxu0
      %v2434 = vadd.f32 %v2313, %v2433
      %v2435 = vpop.f32.mrb[0].mxu0
      %2436 = vmatprep.mubr.bf16.mxu0 0
      %2437 = vmatmul.mubr.bf16.gmra.mrb[0].mxu0 %v2347
      %v2438 = vpop.f32.mrb[0].mxu0
      %v2439 = vadd.f32 %v2313, %v2438
      %v2440 = vpop.f32.mrb[0].mxu0
      %v2441 = vpop.f32.mrb[0].mxu0
      %v2442 = vadd.f32 %v2313, %v2441
      %v2443 = vpop.f32.mrb[0].mxu0
      %2444 = vmatprep.mubr.bf16.mxu0 0
      %2445 = vmatmul.mubr.bf16.gmra.mrb[0].mxu0 %v2350
      %v2446 = vpop.f32.mrb[0].mxu0
      %v2447 = vadd.f32 %v2313, %v2446
      %v2448 = vpop.f32.mrb[0].mxu0
      %v2449 = vpop.f32.mrb[0].mxu0
      %v2450 = vadd.f32 %v2313, %v2449
      %v2451 = vpop.f32.mrb[0].mxu0
      %2452 = vmatprep.mubr.bf16.mxu0 0
      %2453 = vmatmul.mubr.bf16.gmra.mrb[0].mxu0 %v2353
      %v2454 = vpop.f32.mrb[0].mxu0
      %v2455 = vadd.f32 %v2313, %v2454
      %v2456 = vpop.f32.mrb[0].mxu0
      %v2457 = vpop.f32.mrb[0].mxu0
      %v2458 = vadd.f32 %v2313, %v2457
      %v2459 = vpop.f32.mrb[0].mxu0
      %2460 = vmatprep.mubr.bf16.mxu0 0
      %2461 = vmatmul.mubr.bf16.gmra.mrb[0].mxu0 %v2356
      %v2462 = vpop.f32.mrb[0].mxu0
      %v2463 = vadd.f32 %v2313, %v2462
      %v2464 = vpop.f32.mrb[0].mxu0
      %v2465 = vpop.f32.mrb[0].mxu0
      %v2466 = vadd.f32 %v2313, %v2465
      %v2467 = vpop.f32.mrb[0].mxu0
      %2468 = vmatprep.mubr.bf16.mxu0 0
      %2469 = vmatmul.mubr.bf16.gmra.mrb[0].mxu0 %v2359
      %v2470 = vpop.f32.mrb[0].mxu0
      %v2471 = vadd.f32 %v2313, %v2470
      %v2472 = vpop.f32.mrb[0].mxu0
      %v2473 = vpop.f32.mrb[0].mxu0
      %v2474 = vadd.f32 %v2313, %v2473
      %v2475 = vpop.f32.mrb[0].mxu0
      %2476 = vmatprep.mubr.bf16.mxu0 0
      %2477 = vmatmul.mubr.bf16.gmra.mrb[0].mxu0 %v2362
      %v2478 = vpop.f32.mrb[0].mxu0
      %v2479 = vadd.f32 %v2313, %v2478
      %v2480 = vpop.f32.mrb[0].mxu0
      %v2481 = vpop.f32.mrb[0].mxu0
      %v2482 = vadd.f32 %v2313, %v2481
      %v2483 = vpop.f32.mrb[0].mxu0
      %2484 = vmatprep.mubr.bf16.mxu0 0
      %2485 = vmatmul.mubr.bf16.gmra.mrb[0].mxu0 %v2365
      %v2486 = vpop.f32.mrb[0].mxu0
      %v2487 = vadd.f32 %v2313, %v2486
      %v2488 = vpop.f32.mrb[0].mxu0
      %v2489 = vpop.f32.mrb[0].mxu0
      %v2490 = vadd.f32 %v2313, %v2489
      %v2491 = vpop.f32.mrb[0].mxu0
      %2492 = vmatprep.mubr.bf16.mxu0 0
      %2493 = vmatmul.mubr.bf16.gmra.mrb[0].mxu0 %v2368
      %v2494 = vpop.f32.mrb[0].mxu0
      %v2495 = vadd.f32 %v2313, %v2494
      %v2496 = vpop.f32.mrb[0].mxu0
      %v2497 = vpop.f32.mrb[0].mxu0
      %v2498 = vadd.f32 %v2313, %v2497
      %v2499 = vpop.f32.mrb[0].mxu0
      %2500 = vmatprep.mubr.bf16.mxu0 0
      %2501 = vmatmul.mubr.bf16.gmra.mrb[0].mxu0 %v2371
      %v2502 = vpop.f32.mrb[0].mxu0
      %v2503 = vadd.f32 %v2313, %v2502
      %v2504 = vpop.f32.mrb[0].mxu0
      %v2505 = vpop.f32.mrb[0].mxu0
      %v2506 = vadd.f32 %v2313, %v2505
      %v2507 = vpop.f32.mrb[0].mxu0
      %2508 = vmatprep.mubr.bf16.mxu0 0
      %2509 = vmatmul.mubr.bf16.gmra.mrb[0].mxu0 %v2374
      %v2510 = vpop.f32.mrb[0].mxu0
      %v2511 = vadd.f32 %v2313, %v2510
      %v2512 = vpop.f32.mrb[0].mxu0
      %v2513 = vpop.f32.mrb[0].mxu0
      %v2514 = vadd.f32 %v2313, %v2513
      %v2515 = vpop.f32.mrb[0].mxu0
      %2516 = vmatprep.mubr.bf16.mxu0 0
      %2517 = vmatmul.mubr.bf16.gmra.mrb[0].mxu0 %v2377
      %v2518 = vpop.f32.mrb[0].mxu0
      %v2519 = vadd.f32 %v2313, %v2518
      %v2520 = vpop.f32.mrb[0].mxu0
      %v2521 = vpop.f32.mrb[0].mxu0
      %v2522 = vadd.f32 %v2313, %v2521
      %v2523 = vpop.f32.mrb[0].mxu0
      %2524 = vmatprep.mubr.bf16.mxu0 0
      %2525 = vmatmul.mubr.bf16.gmra.mrb[0].mxu0 %v2380
      %v2526 = vpop.f32.mrb[0].mxu0
      %v2527 = vadd.f32 %v2313, %v2526
      %v2528 = vpop.f32.mrb[0].mxu0
      %v2529 = vpop.f32.mrb[0].mxu0
      %v2530 = vadd.f32 %v2313, %v2529
      %v2531 = vpop.f32.mrb[0].mxu0
      %2532 = vmatprep.mubr.bf16.mxu0 0
      %2533 = vmatmul.mubr.bf16.gmra.mrb[0].mxu0 %v2383
      %v2534 = vpop.f32.mrb[0].mxu0
      %v2535 = vadd.f32 %v2313, %v2534
      %v2536 = vpop.f32.mrb[0].mxu0
      %v2537 = vpop.f32.mrb[0].mxu0
      %v2538 = vadd.f32 %v2313, %v2537
      %v2539 = vpop.f32.mrb[0].mxu0
      %2540 = vmatprep.mubr.bf16.mxu0 0
      %2541 = vmatmul.mubr.bf16.gmra.mrb[0].mxu0 %v2386
      %v2542 = vpop.f32.mrb[0].mxu0
      %v2543 = vadd.f32 %v2313, %v2542
      %v2544 = vpop.f32.mrb[0].mxu0
      %v2545 = vpop.f32.mrb[0].mxu0
      %v2546 = vadd.f32 %v2313, %v2545
      %v2547 = vpop.f32.mrb[0].mxu0
      %2548 = vdwg.mxu0
      %v2549 = vtanh.pop %v2423
      %v2550 = vtanh.pop %v2426
      %v2551 = vtanh.pop %v2431
      %v2552 = vtanh.pop %v2434
      %v2553 = vtanh.pop %v2439
      %v2554 = vtanh.pop %v2442
      %v2555 = vtanh.pop %v2447
      %v2556 = vtanh.pop %v2450
      %v2557 = vtanh.pop %v2455
      %v2558 = vtanh.pop %v2458
      %v2559 = vtanh.pop %v2463
      %v2560 = vtanh.pop %v2466
      %v2561 = vtanh.pop %v2471
      %v2562 = vtanh.pop %v2474
      %v2563 = vtanh.pop %v2479
      %v2564 = vtanh.pop %v2482
      %v2565 = vtanh.pop %v2487
      %v2566 = vtanh.pop %v2490
      %v2567 = vtanh.pop %v2495
      %v2568 = vtanh.pop %v2498
      %v2569 = vtanh.pop %v2503
      %v2570 = vtanh.pop %v2506
      %v2571 = vtanh.pop %v2511
      %v2572 = vtanh.pop %v2514
      %v2573 = vtanh.pop %v2519
      %v2574 = vtanh.pop %v2522
      %v2575 = vtanh.pop %v2527
      %v2576 = vtanh.pop %v2530
      %v2577 = vtanh.pop %v2535
      %v2578 = vtanh.pop %v2538
      %v2579 = vtanh.pop %v2543
      %v2580 = vtanh.pop %v2546
      %2613 = vrot.lane.b32.xlu0 %v2549, 64
      %v2614 = vpop.permute.xlu0 %2613
      %2615 = vrot.lane.b32.xlu0 %v2550, 64
      %v2616 = vpop.permute.xlu0 %2615
      %2617 = vrot.lane.b32.xlu0 %v2551, 64
      %v2618 = vpop.permute.xlu0 %2617
      %2619 = vrot.lane.b32.xlu0 %v2552, 64
      %v2620 = vpop.permute.xlu0 %2619
      %2621 = vrot.lane.b32.xlu0 %v2553, 64
      %v2622 = vpop.permute.xlu0 %2621
      %2623 = vrot.lane.b32.xlu0 %v2554, 64
      %v2624 = vpop.permute.xlu0 %2623
      %2625 = vrot.lane.b32.xlu0 %v2555, 64
      %v2626 = vpop.permute.xlu0 %2625
      %2627 = vrot.lane.b32.xlu0 %v2556, 64
      %v2628 = vpop.permute.xlu0 %2627
      %2629 = vrot.lane.b32.xlu0 %v2557, 64
      %v2630 = vpop.permute.xlu0 %2629
      %2631 = vrot.lane.b32.xlu0 %v2558, 64
      %v2632 = vpop.permute.xlu0 %2631
      %2633 = vrot.lane.b32.xlu0 %v2559, 64
      %v2634 = vpop.permute.xlu0 %2633
      %2635 = vrot.lane.b32.xlu0 %v2560, 64
      %v2636 = vpop.permute.xlu0 %2635
      %2637 = vrot.lane.b32.xlu0 %v2561, 64
      %v2638 = vpop.permute.xlu0 %2637
      %2639 = vrot.lane.b32.xlu0 %v2562, 64
      %v2640 = vpop.permute.xlu0 %2639
      %2641 = vrot.lane.b32.xlu0 %v2563, 64
      %v2642 = vpop.permute.xlu0 %2641
      %2643 = vrot.lane.b32.xlu0 %v2564, 64
      %v2644 = vpop.permute.xlu0 %2643
      %2645 = vrot.lane.b32.xlu0 %v2565, 64
      %v2646 = vpop.permute.xlu0 %2645
      %2647 = vrot.lane.b32.xlu0 %v2566, 64
      %v2648 = vpop.permute.xlu0 %2647
      %2649 = vrot.lane.b32.xlu0 %v2567, 64
      %v2650 = vpop.permute.xlu0 %2649
      %2651 = vrot.lane.b32.xlu0 %v2568, 64
      %v2652 = vpop.permute.xlu0 %2651
      %2653 = vrot.lane.b32.xlu0 %v2569, 64
      %v2654 = vpop.permute.xlu0 %2653
      %2655 = vrot.lane.b32.xlu0 %v2570, 64
      %v2656 = vpop.permute.xlu0 %2655
      %2657 = vrot.lane.b32.xlu0 %v2571, 64
      %v2658 = vpop.permute.xlu0 %2657
      %2659 = vrot.lane.b32.xlu0 %v2572, 64
      %v2660 = vpop.permute.xlu0 %2659
      %2661 = vrot.lane.b32.xlu0 %v2573, 64
      %v2662 = vpop.permute.xlu0 %2661
      %2663 = vrot.lane.b32.xlu0 %v2574, 64
      %v2664 = vpop.permute.xlu0 %2663
      %2665 = vrot.lane.b32.xlu0 %v2575, 64
      %v2666 = vpop.permute.xlu0 %2665
      %2667 = vrot.lane.b32.xlu0 %v2576, 64
      %v2668 = vpop.permute.xlu0 %2667
      %2669 = vrot.lane.b32.xlu0 %v2577, 64
      %v2670 = vpop.permute.xlu0 %2669
      %2671 = vrot.lane.b32.xlu0 %v2578, 64
      %v2672 = vpop.permute.xlu0 %2671
      %2673 = vrot.lane.b32.xlu0 %v2579, 64
      %v2674 = vpop.permute.xlu0 %2673
      %2675 = vrot.lane.b32.xlu0 %v2580, 64
      %v2676 = vpop.permute.xlu0 %2675
      %v2709 = vmul.f32 %v2549, %v2614
      %v2710 = vmul.f32 %v2550, %v2616
      %v2711 = vmul.f32 %v2551, %v2618
      %v2712 = vmul.f32 %v2552, %v2620
      %v2713 = vmul.f32 %v2553, %v2622
      %v2714 = vmul.f32 %v2554, %v2624
      %v2715 = vmul.f32 %v2555, %v2626
      %v2716 = vmul.f32 %v2556, %v2628
      %v2717 = vmul.f32 %v2557, %v2630
      %v2718 = vmul.f32 %v2558, %v2632
      %v2719 = vmul.f32 %v2559, %v2634
      %v2720 = vmul.f32 %v2560, %v2636
      %v2721 = vmul.f32 %v2561, %v2638
      %v2722 = vmul.f32 %v2562, %v2640
      %v2723 = vmul.f32 %v2563, %v2642
      %v2724 = vmul.f32 %v2564, %v2644
      %v2725 = vmul.f32 %v2565, %v2646
      %v2726 = vmul.f32 %v2566, %v2648
      %v2727 = vmul.f32 %v2567, %v2650
      %v2728 = vmul.f32 %v2568, %v2652
      %v2729 = vmul.f32 %v2569, %v2654
      %v2730 = vmul.f32 %v2570, %v2656
      %v2731 = vmul.f32 %v2571, %v2658
      %v2732 = vmul.f32 %v2572, %v2660
      %v2733 = vmul.f32 %v2573, %v2662
      %v2734 = vmul.f32 %v2574, %v2664
      %v2735 = vmul.f32 %v2575, %v2666
      %v2736 = vmul.f32 %v2576, %v2668
      %v2737 = vmul.f32 %v2577, %v2670
      %v2738 = vmul.f32 %v2578, %v2672
      %v2739 = vmul.f32 %v2579, %v2674
      %v2740 = vmul.f32 %v2580, %v2676
      %2741 = vxpose.xlu0.b32.start [1/16] %v2709, 128
      %2742 = vxpose.xlu0.b32.cont [2/16] %v2710, 128
      %2743 = vxpose.xlu0.b32.cont [3/16] %v2711, 128
      %2744 = vxpose.xlu0.b32.cont [4/16] %v2712, 128
      %2745 = vxpose.xlu0.b32.cont [5/16] %v2713, 128
      %2746 = vxpose.xlu0.b32.cont [6/16] %v2714, 128
      %2747 = vxpose.xlu0.b32.cont [7/16] %v2715, 128
      %2748 = vxpose.xlu0.b32.cont [8/16] %v2716, 128
      %2749 = vxpose.xlu0.b32.cont [9/16] %v2717, 128
      %2750 = vxpose.xlu0.b32.cont [10/16] %v2718, 128
      %2751 = vxpose.xlu0.b32.cont [11/16] %v2719, 128
      %2752 = vxpose.xlu0.b32.cont [12/16] %v2720, 128
      %2753 = vxpose.xlu0.b32.cont [13/16] %v2721, 128
      %2754 = vxpose.xlu0.b32.cont [14/16] %v2722, 128
      %2755 = vxpose.xlu0.b32.cont [15/16] %v2723, 128
      %2756 = vxpose.xlu0.b32.end [16/16] %v2724, 128
      %v2757 = vpop.trf.xlu0
      %v2758 = vpop.trf.xlu0
      %v2759 = vpop.trf.xlu0
      %v2760 = vpop.trf.xlu0
      %v2761 = vpop.trf.xlu0
      %v2762 = vpop.trf.xlu0
      %v2763 = vpop.trf.xlu0
      %v2764 = vpop.trf.xlu0
      %v2765 = vpop.trf.xlu0
      %v2766 = vpop.trf.xlu0
      %v2767 = vpop.trf.xlu0
      %v2768 = vpop.trf.xlu0
      %v2769 = vpop.trf.xlu0
      %v2770 = vpop.trf.xlu0
      %v2771 = vpop.trf.xlu0
      %v2772 = vpop.trf.xlu0
      %2773 = vxpose.xlu0.b32.start [1/16] %v2725, 128
      %2774 = vxpose.xlu0.b32.cont [2/16] %v2726, 128
      %2775 = vxpose.xlu0.b32.cont [3/16] %v2727, 128
      %2776 = vxpose.xlu0.b32.cont [4/16] %v2728, 128
      %2777 = vxpose.xlu0.b32.cont [5/16] %v2729, 128
      %2778 = vxpose.xlu0.b32.cont [6/16] %v2730, 128
      %2779 = vxpose.xlu0.b32.cont [7/16] %v2731, 128
      %2780 = vxpose.xlu0.b32.cont [8/16] %v2732, 128
      %2781 = vxpose.xlu0.b32.cont [9/16] %v2733, 128
      %2782 = vxpose.xlu0.b32.cont [10/16] %v2734, 128
      %2783 = vxpose.xlu0.b32.cont [11/16] %v2735, 128
      %2784 = vxpose.xlu0.b32.cont [12/16] %v2736, 128
      %2785 = vxpose.xlu0.b32.cont [13/16] %v2737, 128
      %2786 = vxpose.xlu0.b32.cont [14/16] %v2738, 128
      %2787 = vxpose.xlu0.b32.cont [15/16] %v2739, 128
      %2788 = vxpose.xlu0.b32.end [16/16] %v2740, 128
      %v2789 = vpop.trf.xlu0
      %v2790 = vpop.trf.xlu0
      %v2791 = vpop.trf.xlu0
      %v2792 = vpop.trf.xlu0
      %v2793 = vpop.trf.xlu0
      %v2794 = vpop.trf.xlu0
      %v2795 = vpop.trf.xlu0
      %v2796 = vpop.trf.xlu0
      %v2797 = vpop.trf.xlu0
      %v2798 = vpop.trf.xlu0
      %v2799 = vpop.trf.xlu0
      %v2800 = vpop.trf.xlu0
      %v2801 = vpop.trf.xlu0
      %v2802 = vpop.trf.xlu0
      %v2803 = vpop.trf.xlu0
      %v2804 = vpop.trf.xlu0
      %v2805 = vadd.f32 %v2757, %v2758
      %v2806 = vadd.f32 %v2805, %v2759
      %v2807 = vadd.f32 %v2806, %v2760
      %v2808 = vadd.f32 %v2807, %v2761
      %v2809 = vadd.f32 %v2808, %v2762
      %v2810 = vadd.f32 %v2809, %v2763
      %v2811 = vadd.f32 %v2810, %v2764
      %v2812 = vrot.slane %v2811, 4
      %v2813 = vadd.f32 %v2811, %v2812
      %v2814 = vrot.slane %v2813, 2
      %v2815 = vadd.f32 %v2813, %v2814
      %v2816 = vrot.slane %v2815, 1
      %v2817 = vadd.f32 %v2815, %v2816
      %v2818 = vadd.f32 %v2789, %v2790
      %v2819 = vadd.f32 %v2818, %v2791
      %v2820 = vadd.f32 %v2819, %v2792
      %v2821 = vadd.f32 %v2820, %v2793
      %v2822 = vadd.f32 %v2821, %v2794
      %v2823 = vadd.f32 %v2822, %v2795
      %v2824 = vadd.f32 %v2823, %v2796
      %v2825 = vrot.slane %v2824, 4
      %v2826 = vadd.f32 %v2824, %v2825
      %v2827 = vrot.slane %v2826, 2
      %v2828 = vadd.f32 %v2826, %v2827
      %v2829 = vrot.slane %v2828, 1
      %v2830 = vadd.f32 %v2828, %v2829
      %v2831 = vxor.u32 %v2817, 2147483648
      %v2832 = vxor.u32 %v2830, 2147483648
      %v2833 = vmul.f32 %v2831, 1.442695
      %v2834 = vpow.pop %v2833
      %v2835 = vmul.f32 %v2832, 1.442695
      %v2836 = vpow.pop %v2835
      %v2837 = vadd.f32 %v2834, 1.0
      %v2838 = vadd.f32 %v2836, 1.0
      %v2839 = vrcp.pop %v2837
      %v2840 = vmul.f32 1.0, %v2839
      %v2841 = vrcp.pop %v2838
      %v2842 = vmul.f32 1.0, %v2841
      %v2845 = vcombine.low %v2840, %v2842
      %v2847 = vunpack.c.l.s4 1966171168
      %v2848 = vunpack.c.0.s8 %v2847
      %v2849 = vlaneseq
      %v2850 = vshrl.u32 %v2849, 7
      %v2851 = vsub.s32 %v2848, %v2850
      %v2852 = vrot.slane %v2845, %v2851
      %v2854 = vunpack.c.l.s4 1966171168
      %v2855 = vunpack.c.0.s8 %v2854
      %v2856 = vlaneseq
      %v2857 = vshrl.u32 %v2856, 7
      %v2858 = vsub.s32 %v2855, %v2857
      %v2859 = vrot.slane %v2852, %v2858
      %v2861 = vlaneseq
      %vm2862 = vcmp.ge.s32.totalorder %v2861, 0
      %vm2863 = vcmp.lt.s32.totalorder %v2861, 256
      %vm2864 = vmand %vm2862, %vm2863
      %2865 = vst.msk [vmem:[%s414] sm:$0x3] %vm2864, %v2859
      %s2866 = smul.u32 2, %s22
      %p2867 = scmp.lt.s32.totalorder %s2866, 3
      %s2868 = scalar_select %p2867, %s2866, 3
      %s2869 = scalar_lea.vmem %s11, %s2868
      // Predicated region
      $region65: #{imc_forward.1} parent=63 // pred_check
        %p2870 = pneg %p281
      $region66: #{imc_forward.1} parent=63 // pred_check_branch
        %2872 = sbr.rel (%p2870) target = $region68
      $region67: #{imc_forward.1} parent=63 // pred_region
        %s2873 = smul.u32 2, %s22
      $region68: #{imc_forward.1} parent=63 // pred_fallthru
        _
    $region64: #{imc_forward.1} parent=5 // pred_fallthru
      _
    %p2874 = scmp.le.s32.totalorder 2, %s17
    // Predicated region
    $region69: #{imc_forward.1} parent=5 // pred_check
      %p2875 = pneg %p2874
    $region70: #{imc_forward.1} parent=5 // pred_check_branch
      %2877 = sbr.rel (%p2875) target = $region72
    $region71: #{imc_forward.1} parent=5 // pred_region
      %s2878 = ssub.s32 %s17, 2
      // Predicated region
      $region73: #{imc_forward.1} parent=71 // pred_check
        %p2879 = pneg %p287
      $region74: #{imc_forward.1} parent=71 // pred_check_branch
        %2881 = sbr.rel (%p2879) target = $region76
      $region75: #{imc_forward.1} parent=71 // pred_region
        %s2882 = smul.u32 2, %s23
        %p2883 = scmp.lt.s32.totalorder %s2882, 3
        %s2884 = scalar_select %p2883, %s2882, 3
        %s2885 = scalar_lea.vmem %s11, %s2884
      $region76: #{imc_forward.1} parent=71 // pred_fallthru
        _
    $region72: #{imc_forward.1} parent=5 // pred_fallthru
      _
  $region6: #{imc_forward.1} parent=0 // loop_footer
    %s21 = sadd.s32 1, %s17
  $region7: #{imc_forward.1} parent=0 // loop_footer_branch
    %16 = sbr.rel target = $region3
  $region8: #{imc_forward.1} parent=0 // loop_exit
    _

</llo_original>
